<compile_context>
chip_gen: v5e
topology: v5e:2x2
jax: 0.10.0
libtpu: 0.0.40
codegen_flags: <defaults>
</compile_context>

<pallas_src>
import functools
import math

import jax
import jax.numpy as jnp
from jax.experimental import pallas as pl
from jax.experimental.pallas import tpu as pltpu  # noqa: F401  (TPU backend assumed)

# ----- small BERT-like config (real bert-base-cased: 12 layers x 768 hidden) -----
VOCAB = 100
HIDDEN = 32
LAYERS = 2
HEADS = 4
HEAD_DIM = HIDDEN // HEADS
FFN = 4 * HIDDEN
NUM_CLASSES = 5
CLS_PAD = 128          # lane-dense padding for the classifier output
LN_EPS = 1e-12


# --------------------------- fused Pallas kernel ---------------------------

def _bert_fused_kernel(x_ref, bias_ref, emb_g_ref, emb_b_ref,
                       wqkv_ref, bqkv_ref, wo_ref, bo_ref,
                       ln1g_ref, ln1b_ref, w1_ref, b1_ref, w2_ref, b2_ref,
                       ln2g_ref, ln2b_ref,
                       poolw_ref, poolb_ref, clsw_ref, clsb_ref,
                       out_ref, *, batch, seq):
    """Whole BertClassifier forward in one kernel.

    x:[B*S,H] embedded input, bias:[B,1,S] additive key-padding mask,
    per-layer weights stacked on a leading LAYERS axis, out:[B*S, CLS_PAD].
    The 1/sqrt(head_dim) attention scale is pre-folded into the Q weights.
    """

    def layernorm(x, g, b):
        mu = jnp.mean(x, axis=-1, keepdims=True)
        var = jnp.mean((x - mu) * (x - mu), axis=-1, keepdims=True)
        return (x - mu) * jax.lax.rsqrt(var + LN_EPS) * g + b

    def gelu(x):
        # TODO(synk): HF BertModel uses exact erf-GELU; tanh approximation kept here.
        return 0.5 * x * (1.0 + jnp.tanh(0.7978845608028654 * (x + 0.044715 * x * x * x)))

    # Embedding LayerNorm (residual-free) -- hoisted loads, stay in vregs.
    x = layernorm(x_ref[...], emb_g_ref[...], emb_b_ref[...])      # [B*S, H]
    bias = bias_ref[...]                                            # [B, 1, S]

    # Statically unrolled encoder layers; all intermediates stay in VMEM/vregs.
    for l in range(LAYERS):
        # Fused QKV projection: one [B*S,H] @ [H,3H] matmul (scale folded into Wq).
        qkv = jnp.dot(x, wqkv_ref[l], preferred_element_type=jnp.float32) + bqkv_ref[l]
        qkv3 = qkv.reshape(batch, seq, 3 * HIDDEN)                  # [B, S, 3H]

        wo_l = wo_ref[l]                                            # [H, H]
        attn_out = bo_ref[l]                                        # [1, H], broadcasts
        for h in range(HEADS):
            q_h = qkv3[:, :, h * HEAD_DIM:(h + 1) * HEAD_DIM]                       # [B,S,D]
            k_h = qkv3[:, :, HIDDEN + h * HEAD_DIM:HIDDEN + (h + 1) * HEAD_DIM]     # [B,S,D]
            v_h = qkv3[:, :, 2 * HIDDEN + h * HEAD_DIM:2 * HIDDEN + (h + 1) * HEAD_DIM]
            s = jnp.einsum('bqd,bkd->bqk', q_h, k_h,
                           preferred_element_type=jnp.float32) + bias               # [B,S,S]
            s = s - jnp.max(s, axis=-1, keepdims=True)              # stable softmax
            e = jnp.exp(s)
            p = e * pl.reciprocal(jnp.sum(e, axis=-1, keepdims=True), approx=True)
            ctx_h = jnp.einsum('bqk,bkd->bqd', p, v_h,
                               preferred_element_type=jnp.float32)                  # [B,S,D]
            # Project this head's context through its slice of W_o and accumulate:
            # avoids concatenating 8-lane-wide head outputs.
            attn_out = attn_out + jnp.dot(
                ctx_h.reshape(batch * seq, HEAD_DIM),
                wo_l[h * HEAD_DIM:(h + 1) * HEAD_DIM, :],
                preferred_element_type=jnp.float32)                                 # [B*S,H]

        x = layernorm(attn_out + x, ln1g_ref[l], ln1b_ref[l])

        h1 = gelu(jnp.dot(x, w1_ref[l], preferred_element_type=jnp.float32) + b1_ref[l])
        h2 = jnp.dot(h1, w2_ref[l], preferred_element_type=jnp.float32) + b2_ref[l]
        x = layernorm(h2 + x, ln2g_ref[l], ln2b_ref[l])

    # BERT pooler + classifier head, computed for all rows (the wrapper keeps the
    # [CLS] row of each sequence); output is a full lane-dense [B*S, 128] tile so
    # the single store is an unmasked vst.
    pooled = jnp.tanh(jnp.dot(x, poolw_ref[...], preferred_element_type=jnp.float32)
                      + poolb_ref[...])
    # nn.Dropout(0.5) is identity at inference (eval mode) -> no-op here.
    logits = jnp.dot(pooled, clsw_ref[...], preferred_element_type=jnp.float32) + clsb_ref[...]
    out_ref[...] = jnp.maximum(logits, 0.0).astype(out_ref.dtype)   # ReLU


# --------------------------- parameters ---------------------------

def init_params(key, max_pos):
    std = 0.02

    def nrm(k, shape):
        return std * jax.random.normal(k, shape, dtype=jnp.float32)

    keys = iter(jax.random.split(key, 5 + 6 * LAYERS))

    word_emb = nrm(next(keys), (VOCAB, HIDDEN))
    pos_emb = nrm(next(keys), (max_pos, HIDDEN))
    type_emb = nrm(next(keys), (2, HIDDEN))
    pool_w = nrm(next(keys), (HIDDEN, HIDDEN))
    # classifier (nn.Linear(768, 5) analogue), zero-padded to 128 output lanes
    cls_w = jnp.zeros((HIDDEN, CLS_PAD), jnp.float32)
    cls_w = cls_w.at[:, :NUM_CLASSES].set(nrm(next(keys), (HIDDEN, NUM_CLASSES)))

    attn_scale = 1.0 / math.sqrt(HEAD_DIM)
    wqkv_l, wo_l, w1_l, w2_l = [], [], [], []
    for _ in range(LAYERS):
        # Fold the 1/sqrt(head_dim) attention scale into Wq (q bias is zero, so
        # no further fold needed); removes the per-score multiply in the kernel.
        wq = nrm(next(keys), (HIDDEN, HIDDEN)) * attn_scale
        wk = nrm(next(keys), (HIDDEN, HIDDEN))
        wv = nrm(next(keys), (HIDDEN, HIDDEN))
        wqkv_l.append(jnp.concatenate([wq, wk, wv], axis=1))        # [H, 3H]
        wo_l.append(nrm(next(keys), (HIDDEN, HIDDEN)))
        w1_l.append(nrm(next(keys), (HIDDEN, FFN)))
        w2_l.append(nrm(next(keys), (FFN, HIDDEN)))

    return dict(
        word_emb=word_emb, pos_emb=pos_emb, type_emb=type_emb,
        emb_ln_g=jnp.ones((1, HIDDEN), jnp.float32),
        emb_ln_b=jnp.zeros((1, HIDDEN), jnp.float32),
        wqkv=jnp.stack(wqkv_l), bqkv=jnp.zeros((LAYERS, 1, 3 * HIDDEN), jnp.float32),
        wo=jnp.stack(wo_l), bo=jnp.zeros((LAYERS, 1, HIDDEN), jnp.float32),
        ln1_g=jnp.ones((LAYERS, 1, HIDDEN), jnp.float32),
        ln1_b=jnp.zeros((LAYERS, 1, HIDDEN), jnp.float32),
        w1=jnp.stack(w1_l), b1=jnp.zeros((LAYERS, 1, FFN), jnp.float32),
        w2=jnp.stack(w2_l), b2=jnp.zeros((LAYERS, 1, HIDDEN), jnp.float32),
        ln2_g=jnp.ones((LAYERS, 1, HIDDEN), jnp.float32),
        ln2_b=jnp.zeros((LAYERS, 1, HIDDEN), jnp.float32),
        pool_w=pool_w, pool_b=jnp.zeros((1, HIDDEN), jnp.float32),
        cls_w=cls_w, cls_b=jnp.zeros((1, CLS_PAD), jnp.float32),
    )


# --------------------------- forward pass ---------------------------

@jax.jit
def bert_classifier_forward(params, input_id, mask):
    B, S = input_id.shape

    # Embedding gather is glue (data-dependent lookup); everything after is one kernel.
    # TODO(synk): token-type embedding hard-coded to segment 0 (single-segment inputs).
    x = (params["word_emb"][input_id]
         + params["pos_emb"][jnp.arange(S)][None, :, :]
         + params["type_emb"][0][None, None, :]).reshape(B * S, HIDDEN)

    # Additive key-padding bias: 0 where attend, -1e9 where padding.
    mask_bias = ((1.0 - mask.astype(jnp.float32)) * (-1e9)).reshape(B, 1, S)

    out_pad = pl.pallas_call(
        functools.partial(_bert_fused_kernel, batch=B, seq=S),
        out_shape=jax.ShapeDtypeStruct((B * S, CLS_PAD), jnp.float32),
    )(x, mask_bias,
      params["emb_ln_g"], params["emb_ln_b"],
      params["wqkv"], params["bqkv"], params["wo"], params["bo"],
      params["ln1_g"], params["ln1_b"], params["w1"], params["b1"],
      params["w2"], params["b2"], params["ln2_g"], params["ln2_b"],
      params["pool_w"], params["pool_b"], params["cls_w"], params["cls_b"])

    # Keep the [CLS] (token 0) row of each sequence and the real 5 classes.
    return out_pad.reshape(B, S, CLS_PAD)[:, 0, :NUM_CLASSES]       # [B, NUM_CLASSES]


# --------------------------- main ---------------------------

if __name__ == "__main__":
    B, S = 2, 8
    key = jax.random.PRNGKey(0)
    k_ids, k_params = jax.random.split(key)

    input_id = jax.random.randint(k_ids, (B, S), 0, VOCAB, dtype=jnp.int32)
    # second sequence has 2 padding tokens at the end
    lengths = jnp.array([[S], [S - 2]], dtype=jnp.int32)
    mask = (jnp.arange(S)[None, :] < lengths).astype(jnp.int32)

    params = init_params(k_params, max_pos=S)

    out = bert_classifier_forward(params, input_id, mask)
    out = jax.block_until_ready(out)
    assert out.shape == (B, NUM_CLASSES)
    assert bool(jnp.all(out >= 0.0))   # ReLU output is non-negative
    print("KERNEL_OK")
</pallas_src>

<mosaic_0001>
module attributes {stable_mosaic.version = 11 : i64} {
  func.func @_bert_fused_kernel(%arg0: memref<16x32xf32, #tpu.memory_space<vmem>>, %arg1: memref<2x1x8xf32, #tpu.memory_space<vmem>>, %arg2: memref<1x32xf32, #tpu.memory_space<vmem>>, %arg3: memref<1x32xf32, #tpu.memory_space<vmem>>, %arg4: memref<2x32x96xf32, #tpu.memory_space<vmem>>, %arg5: memref<2x1x96xf32, #tpu.memory_space<vmem>>, %arg6: memref<2x32x32xf32, #tpu.memory_space<vmem>>, %arg7: memref<2x1x32xf32, #tpu.memory_space<vmem>>, %arg8: memref<2x1x32xf32, #tpu.memory_space<vmem>>, %arg9: memref<2x1x32xf32, #tpu.memory_space<vmem>>, %arg10: memref<2x32x128xf32, #tpu.memory_space<vmem>>, %arg11: memref<2x1x128xf32, #tpu.memory_space<vmem>>, %arg12: memref<2x128x32xf32, #tpu.memory_space<vmem>>, %arg13: memref<2x1x32xf32, #tpu.memory_space<vmem>>, %arg14: memref<2x1x32xf32, #tpu.memory_space<vmem>>, %arg15: memref<2x1x32xf32, #tpu.memory_space<vmem>>, %arg16: memref<32x32xf32, #tpu.memory_space<vmem>>, %arg17: memref<1x32xf32, #tpu.memory_space<vmem>>, %arg18: memref<32x128xf32, #tpu.memory_space<vmem>>, %arg19: memref<1x128xf32, #tpu.memory_space<vmem>>, %arg20: memref<16x128xf32, #tpu.memory_space<vmem>>) attributes {dimension_semantics = [], scalar_prefetch = 0 : i64, scratch_operands = 0 : i64, tpu.core_type = #tpu.core_type<tc>} {
    %c0 = arith.constant 0 : index
    %c0_0 = arith.constant 0 : index
    %0 = vector.load %arg0[%c0, %c0_0] : memref<16x32xf32, #tpu.memory_space<vmem>>, vector<16x32xf32>
    %c0_1 = arith.constant 0 : index
    %c0_2 = arith.constant 0 : index
    %1 = vector.load %arg2[%c0_1, %c0_2] : memref<1x32xf32, #tpu.memory_space<vmem>>, vector<1x32xf32>
    %c0_3 = arith.constant 0 : index
    %c0_4 = arith.constant 0 : index
    %2 = vector.load %arg3[%c0_3, %c0_4] : memref<1x32xf32, #tpu.memory_space<vmem>>, vector<1x32xf32>
    %cst = arith.constant dense<0.000000e+00> : vector<16xf32>
    %3 = vector.multi_reduction <add>, %0, %cst [1] : vector<16x32xf32> to vector<16xf32>
    %4 = vector.shape_cast %3 : vector<16xf32> to vector<16x1xf32>
    %cst_5 = arith.constant 3.200000e+01 : f32
    %5 = vector.broadcast %cst_5 : f32 to vector<16x1xf32>
    %6 = arith.divf %4, %5 : vector<16x1xf32>
    %7 = vector.broadcast %6 : vector<16x1xf32> to vector<16x32xf32>
    %8 = arith.subf %0, %7 : vector<16x32xf32>
    %9 = vector.broadcast %6 : vector<16x1xf32> to vector<16x32xf32>
    %10 = arith.subf %0, %9 : vector<16x32xf32>
    %11 = arith.mulf %8, %10 : vector<16x32xf32>
    %cst_6 = arith.constant dense<0.000000e+00> : vector<16xf32>
    %12 = vector.multi_reduction <add>, %11, %cst_6 [1] : vector<16x32xf32> to vector<16xf32>
    %13 = vector.shape_cast %12 : vector<16xf32> to vector<16x1xf32>
    %cst_7 = arith.constant 3.200000e+01 : f32
    %14 = vector.broadcast %cst_7 : f32 to vector<16x1xf32>
    %15 = arith.divf %13, %14 : vector<16x1xf32>
    %16 = vector.broadcast %6 : vector<16x1xf32> to vector<16x32xf32>
    %17 = arith.subf %0, %16 : vector<16x32xf32>
    %cst_8 = arith.constant 9.99999996E-13 : f32
    %18 = vector.broadcast %cst_8 : f32 to vector<16x1xf32>
    %19 = arith.addf %15, %18 : vector<16x1xf32>
    %20 = math.rsqrt %19 : vector<16x1xf32>
    %21 = vector.broadcast %20 : vector<16x1xf32> to vector<16x32xf32>
    %22 = arith.mulf %17, %21 : vector<16x32xf32>
    %23 = vector.broadcast %1 : vector<1x32xf32> to vector<16x32xf32>
    %24 = arith.mulf %22, %23 : vector<16x32xf32>
    %25 = vector.broadcast %2 : vector<1x32xf32> to vector<16x32xf32>
    %26 = arith.addf %24, %25 : vector<16x32xf32>
    %c0_9 = arith.constant 0 : index
    %c0_10 = arith.constant 0 : index
    %c0_11 = arith.constant 0 : index
    %27 = vector.load %arg1[%c0_9, %c0_10, %c0_11] : memref<2x1x8xf32, #tpu.memory_space<vmem>>, vector<2x1x8xf32>
    %c0_12 = arith.constant 0 : index
    %c0_13 = arith.constant 0 : index
    %c0_14 = arith.constant 0 : index
    %28 = vector.load %arg4[%c0_12, %c0_13, %c0_14] : memref<2x32x96xf32, #tpu.memory_space<vmem>>, vector<1x32x96xf32>
    %29 = vector.shape_cast %28 : vector<1x32x96xf32> to vector<32x96xf32>
    %cst_15 = arith.constant dense<0.000000e+00> : vector<16x96xf32>
    %30 = tpu.matmul %26, %29, %cst_15 {dimension_numbers = #tpu.dot_dimension_numbers<[1], [0], [0], [1], [0, 0, 1, 1], [], []>} : vector<16x32xf32>, vector<32x96xf32>, vector<16x96xf32> -> vector<16x96xf32>
    %c0_16 = arith.constant 0 : index
    %c0_17 = arith.constant 0 : index
    %c0_18 = arith.constant 0 : index
    %31 = vector.load %arg5[%c0_16, %c0_17, %c0_18] : memref<2x1x96xf32, #tpu.memory_space<vmem>>, vector<1x1x96xf32>
    %32 = vector.shape_cast %31 : vector<1x1x96xf32> to vector<1x96xf32>
    %33 = vector.broadcast %32 : vector<1x96xf32> to vector<16x96xf32>
    %34 = arith.addf %30, %33 : vector<16x96xf32>
    %35 = vector.shape_cast %34 : vector<16x96xf32> to vector<2x8x96xf32>
    %c0_19 = arith.constant 0 : index
    %c0_20 = arith.constant 0 : index
    %c0_21 = arith.constant 0 : index
    %36 = vector.load %arg6[%c0_19, %c0_20, %c0_21] : memref<2x32x32xf32, #tpu.memory_space<vmem>>, vector<1x32x32xf32>
    %37 = vector.shape_cast %36 : vector<1x32x32xf32> to vector<32x32xf32>
    %c0_22 = arith.constant 0 : index
    %c0_23 = arith.constant 0 : index
    %c0_24 = arith.constant 0 : index
    %38 = vector.load %arg7[%c0_22, %c0_23, %c0_24] : memref<2x1x32xf32, #tpu.memory_space<vmem>>, vector<1x1x32xf32>
    %39 = vector.shape_cast %38 : vector<1x1x32xf32> to vector<1x32xf32>
    %40 = vector.extract_strided_slice %35 {offsets = [0, 0, 0], sizes = [2, 8, 8], strides = [1, 1, 1]} : vector<2x8x96xf32> to vector<2x8x8xf32>
    %41 = vector.extract_strided_slice %35 {offsets = [0, 0, 32], sizes = [2, 8, 8], strides = [1, 1, 1]} : vector<2x8x96xf32> to vector<2x8x8xf32>
    %42 = vector.extract_strided_slice %35 {offsets = [0, 0, 64], sizes = [2, 8, 8], strides = [1, 1, 1]} : vector<2x8x96xf32> to vector<2x8x8xf32>
    "tpu.trace_start"() <{level = 10 : i32, message = "bqd,bkd->bqk"}> : () -> ()
    %cst_25 = arith.constant dense<0.000000e+00> : vector<2x8x8xf32>
    %43 = tpu.matmul %40, %41, %cst_25 {dimension_numbers = #tpu.dot_dimension_numbers<[2], [2], [1], [1], [0, 0, 0, 1, 1, 1], [0], [0]>} : vector<2x8x8xf32>, vector<2x8x8xf32>, vector<2x8x8xf32> -> vector<2x8x8xf32>
    "tpu.trace_stop"() : () -> ()
    %44 = vector.broadcast %27 : vector<2x1x8xf32> to vector<2x8x8xf32>
    %45 = arith.addf %43, %44 : vector<2x8x8xf32>
    %cst_26 = arith.constant dense<0xFF800000> : vector<2x8xf32>
    %46 = vector.multi_reduction <maximumf>, %45, %cst_26 [2] : vector<2x8x8xf32> to vector<2x8xf32>
    %47 = vector.shape_cast %46 : vector<2x8xf32> to vector<2x8x1xf32>
    %48 = vector.broadcast %47 : vector<2x8x1xf32> to vector<2x8x8xf32>
    %49 = arith.subf %45, %48 : vector<2x8x8xf32>
    %50 = math.exp %49 : vector<2x8x8xf32>
    %cst_27 = arith.constant dense<0.000000e+00> : vector<2x8xf32>
    %51 = vector.multi_reduction <add>, %50, %cst_27 [2] : vector<2x8x8xf32> to vector<2x8xf32>
    %52 = vector.shape_cast %51 : vector<2x8xf32> to vector<2x8x1xf32>
    %53 = tpu.reciprocal %52 {approx = true} : vector<2x8x1xf32> -> vector<2x8x1xf32>
    %54 = vector.broadcast %53 : vector<2x8x1xf32> to vector<2x8x8xf32>
    %55 = arith.mulf %50, %54 : vector<2x8x8xf32>
    "tpu.trace_start"() <{level = 10 : i32, message = "bqk,bkd->bqd"}> : () -> ()
    %cst_28 = arith.constant dense<0.000000e+00> : vector<2x8x8xf32>
    %56 = tpu.matmul %55, %42, %cst_28 {dimension_numbers = #tpu.dot_dimension_numbers<[2], [1], [1], [2], [0, 0, 0, 1, 1, 2], [0], [0]>} : vector<2x8x8xf32>, vector<2x8x8xf32>, vector<2x8x8xf32> -> vector<2x8x8xf32>
    "tpu.trace_stop"() : () -> ()
    %57 = vector.shape_cast %56 : vector<2x8x8xf32> to vector<16x8xf32>
    %58 = vector.extract_strided_slice %37 {offsets = [0, 0], sizes = [8, 32], strides = [1, 1]} : vector<32x32xf32> to vector<8x32xf32>
    %cst_29 = arith.constant dense<0.000000e+00> : vector<16x32xf32>
    %59 = tpu.matmul %57, %58, %cst_29 {dimension_numbers = #tpu.dot_dimension_numbers<[1], [0], [0], [1], [0, 0, 1, 1], [], []>} : vector<16x8xf32>, vector<8x32xf32>, vector<16x32xf32> -> vector<16x32xf32>
    %60 = vector.broadcast %39 : vector<1x32xf32> to vector<16x32xf32>
    %61 = arith.addf %60, %59 : vector<16x32xf32>
    %62 = vector.extract_strided_slice %35 {offsets = [0, 0, 8], sizes = [2, 8, 8], strides = [1, 1, 1]} : vector<2x8x96xf32> to vector<2x8x8xf32>
    %63 = vector.extract_strided_slice %35 {offsets = [0, 0, 40], sizes = [2, 8, 8], strides = [1, 1, 1]} : vector<2x8x96xf32> to vector<2x8x8xf32>
    %64 = vector.extract_strided_slice %35 {offsets = [0, 0, 72], sizes = [2, 8, 8], strides = [1, 1, 1]} : vector<2x8x96xf32> to vector<2x8x8xf32>
    "tpu.trace_start"() <{level = 10 : i32, message = "bqd,bkd->bqk"}> : () -> ()
    %cst_30 = arith.constant dense<0.000000e+00> : vector<2x8x8xf32>
    %65 = tpu.matmul %62, %63, %cst_30 {dimension_numbers = #tpu.dot_dimension_numbers<[2], [2], [1], [1], [0, 0, 0, 1, 1, 1], [0], [0]>} : vector<2x8x8xf32>, vector<2x8x8xf32>, vector<2x8x8xf32> -> vector<2x8x8xf32>
    "tpu.trace_stop"() : () -> ()
    %66 = vector.broadcast %27 : vector<2x1x8xf32> to vector<2x8x8xf32>
    %67 = arith.addf %65, %66 : vector<2x8x8xf32>
    %cst_31 = arith.constant dense<0xFF800000> : vector<2x8xf32>
    %68 = vector.multi_reduction <maximumf>, %67, %cst_31 [2] : vector<2x8x8xf32> to vector<2x8xf32>
    %69 = vector.shape_cast %68 : vector<2x8xf32> to vector<2x8x1xf32>
    %70 = vector.broadcast %69 : vector<2x8x1xf32> to vector<2x8x8xf32>
    %71 = arith.subf %67, %70 : vector<2x8x8xf32>
    %72 = math.exp %71 : vector<2x8x8xf32>
    %cst_32 = arith.constant dense<0.000000e+00> : vector<2x8xf32>
    %73 = vector.multi_reduction <add>, %72, %cst_32 [2] : vector<2x8x8xf32> to vector<2x8xf32>
    %74 = vector.shape_cast %73 : vector<2x8xf32> to vector<2x8x1xf32>
    %75 = tpu.reciprocal %74 {approx = true} : vector<2x8x1xf32> -> vector<2x8x1xf32>
    %76 = vector.broadcast %75 : vector<2x8x1xf32> to vector<2x8x8xf32>
    %77 = arith.mulf %72, %76 : vector<2x8x8xf32>
    "tpu.trace_start"() <{level = 10 : i32, message = "bqk,bkd->bqd"}> : () -> ()
    %cst_33 = arith.constant dense<0.000000e+00> : vector<2x8x8xf32>
    %78 = tpu.matmul %77, %64, %cst_33 {dimension_numbers = #tpu.dot_dimension_numbers<[2], [1], [1], [2], [0, 0, 0, 1, 1, 2], [0], [0]>} : vector<2x8x8xf32>, vector<2x8x8xf32>, vector<2x8x8xf32> -> vector<2x8x8xf32>
    "tpu.trace_stop"() : () -> ()
    %79 = vector.shape_cast %78 : vector<2x8x8xf32> to vector<16x8xf32>
    %80 = vector.extract_strided_slice %37 {offsets = [8, 0], sizes = [8, 32], strides = [1, 1]} : vector<32x32xf32> to vector<8x32xf32>
    %cst_34 = arith.constant dense<0.000000e+00> : vector<16x32xf32>
    %81 = tpu.matmul %79, %80, %cst_34 {dimension_numbers = #tpu.dot_dimension_numbers<[1], [0], [0], [1], [0, 0, 1, 1], [], []>} : vector<16x8xf32>, vector<8x32xf32>, vector<16x32xf32> -> vector<16x32xf32>
    %82 = arith.addf %61, %81 : vector<16x32xf32>
    %83 = vector.extract_strided_slice %35 {offsets = [0, 0, 16], sizes = [2, 8, 8], strides = [1, 1, 1]} : vector<2x8x96xf32> to vector<2x8x8xf32>
    %84 = vector.extract_strided_slice %35 {offsets = [0, 0, 48], sizes = [2, 8, 8], strides = [1, 1, 1]} : vector<2x8x96xf32> to vector<2x8x8xf32>
    %85 = vector.extract_strided_slice %35 {offsets = [0, 0, 80], sizes = [2, 8, 8], strides = [1, 1, 1]} : vector<2x8x96xf32> to vector<2x8x8xf32>
    "tpu.trace_start"() <{level = 10 : i32, message = "bqd,bkd->bqk"}> : () -> ()
    %cst_35 = arith.constant dense<0.000000e+00> : vector<2x8x8xf32>
    %86 = tpu.matmul %83, %84, %cst_35 {dimension_numbers = #tpu.dot_dimension_numbers<[2], [2], [1], [1], [0, 0, 0, 1, 1, 1], [0], [0]>} : vector<2x8x8xf32>, vector<2x8x8xf32>, vector<2x8x8xf32> -> vector<2x8x8xf32>
    "tpu.trace_stop"() : () -> ()
    %87 = vector.broadcast %27 : vector<2x1x8xf32> to vector<2x8x8xf32>
    %88 = arith.addf %86, %87 : vector<2x8x8xf32>
    %cst_36 = arith.constant dense<0xFF800000> : vector<2x8xf32>
    %89 = vector.multi_reduction <maximumf>, %88, %cst_36 [2] : vector<2x8x8xf32> to vector<2x8xf32>
    %90 = vector.shape_cast %89 : vector<2x8xf32> to vector<2x8x1xf32>
    %91 = vector.broadcast %90 : vector<2x8x1xf32> to vector<2x8x8xf32>
    %92 = arith.subf %88, %91 : vector<2x8x8xf32>
    %93 = math.exp %92 : vector<2x8x8xf32>
    %cst_37 = arith.constant dense<0.000000e+00> : vector<2x8xf32>
    %94 = vector.multi_reduction <add>, %93, %cst_37 [2] : vector<2x8x8xf32> to vector<2x8xf32>
    %95 = vector.shape_cast %94 : vector<2x8xf32> to vector<2x8x1xf32>
    %96 = tpu.reciprocal %95 {approx = true} : vector<2x8x1xf32> -> vector<2x8x1xf32>
    %97 = vector.broadcast %96 : vector<2x8x1xf32> to vector<2x8x8xf32>
    %98 = arith.mulf %93, %97 : vector<2x8x8xf32>
    "tpu.trace_start"() <{level = 10 : i32, message = "bqk,bkd->bqd"}> : () -> ()
    %cst_38 = arith.constant dense<0.000000e+00> : vector<2x8x8xf32>
    %99 = tpu.matmul %98, %85, %cst_38 {dimension_numbers = #tpu.dot_dimension_numbers<[2], [1], [1], [2], [0, 0, 0, 1, 1, 2], [0], [0]>} : vector<2x8x8xf32>, vector<2x8x8xf32>, vector<2x8x8xf32> -> vector<2x8x8xf32>
    "tpu.trace_stop"() : () -> ()
    %100 = vector.shape_cast %99 : vector<2x8x8xf32> to vector<16x8xf32>
    %101 = vector.extract_strided_slice %37 {offsets = [16, 0], sizes = [8, 32], strides = [1, 1]} : vector<32x32xf32> to vector<8x32xf32>
    %cst_39 = arith.constant dense<0.000000e+00> : vector<16x32xf32>
    %102 = tpu.matmul %100, %101, %cst_39 {dimension_numbers = #tpu.dot_dimension_numbers<[1], [0], [0], [1], [0, 0, 1, 1], [], []>} : vector<16x8xf32>, vector<8x32xf32>, vector<16x32xf32> -> vector<16x32xf32>
    %103 = arith.addf %82, %102 : vector<16x32xf32>
    %104 = vector.extract_strided_slice %35 {offsets = [0, 0, 24], sizes = [2, 8, 8], strides = [1, 1, 1]} : vector<2x8x96xf32> to vector<2x8x8xf32>
    %105 = vector.extract_strided_slice %35 {offsets = [0, 0, 56], sizes = [2, 8, 8], strides = [1, 1, 1]} : vector<2x8x96xf32> to vector<2x8x8xf32>
    %106 = vector.extract_strided_slice %35 {offsets = [0, 0, 88], sizes = [2, 8, 8], strides = [1, 1, 1]} : vector<2x8x96xf32> to vector<2x8x8xf32>
    "tpu.trace_start"() <{level = 10 : i32, message = "bqd,bkd->bqk"}> : () -> ()
    %cst_40 = arith.constant dense<0.000000e+00> : vector<2x8x8xf32>
    %107 = tpu.matmul %104, %105, %cst_40 {dimension_numbers = #tpu.dot_dimension_numbers<[2], [2], [1], [1], [0, 0, 0, 1, 1, 1], [0], [0]>} : vector<2x8x8xf32>, vector<2x8x8xf32>, vector<2x8x8xf32> -> vector<2x8x8xf32>
    "tpu.trace_stop"() : () -> ()
    %108 = vector.broadcast %27 : vector<2x1x8xf32> to vector<2x8x8xf32>
    %109 = arith.addf %107, %108 : vector<2x8x8xf32>
    %cst_41 = arith.constant dense<0xFF800000> : vector<2x8xf32>
    %110 = vector.multi_reduction <maximumf>, %109, %cst_41 [2] : vector<2x8x8xf32> to vector<2x8xf32>
    %111 = vector.shape_cast %110 : vector<2x8xf32> to vector<2x8x1xf32>
    %112 = vector.broadcast %111 : vector<2x8x1xf32> to vector<2x8x8xf32>
    %113 = arith.subf %109, %112 : vector<2x8x8xf32>
    %114 = math.exp %113 : vector<2x8x8xf32>
    %cst_42 = arith.constant dense<0.000000e+00> : vector<2x8xf32>
    %115 = vector.multi_reduction <add>, %114, %cst_42 [2] : vector<2x8x8xf32> to vector<2x8xf32>
    %116 = vector.shape_cast %115 : vector<2x8xf32> to vector<2x8x1xf32>
    %117 = tpu.reciprocal %116 {approx = true} : vector<2x8x1xf32> -> vector<2x8x1xf32>
    %118 = vector.broadcast %117 : vector<2x8x1xf32> to vector<2x8x8xf32>
    %119 = arith.mulf %114, %118 : vector<2x8x8xf32>
    "tpu.trace_start"() <{level = 10 : i32, message = "bqk,bkd->bqd"}> : () -> ()
    %cst_43 = arith.constant dense<0.000000e+00> : vector<2x8x8xf32>
    %120 = tpu.matmul %119, %106, %cst_43 {dimension_numbers = #tpu.dot_dimension_numbers<[2], [1], [1], [2], [0, 0, 0, 1, 1, 2], [0], [0]>} : vector<2x8x8xf32>, vector<2x8x8xf32>, vector<2x8x8xf32> -> vector<2x8x8xf32>
    "tpu.trace_stop"() : () -> ()
    %121 = vector.shape_cast %120 : vector<2x8x8xf32> to vector<16x8xf32>
    %122 = vector.extract_strided_slice %37 {offsets = [24, 0], sizes = [8, 32], strides = [1, 1]} : vector<32x32xf32> to vector<8x32xf32>
    %cst_44 = arith.constant dense<0.000000e+00> : vector<16x32xf32>
    %123 = tpu.matmul %121, %122, %cst_44 {dimension_numbers = #tpu.dot_dimension_numbers<[1], [0], [0], [1], [0, 0, 1, 1], [], []>} : vector<16x8xf32>, vector<8x32xf32>, vector<16x32xf32> -> vector<16x32xf32>
    %124 = arith.addf %103, %123 : vector<16x32xf32>
    %125 = arith.addf %124, %26 : vector<16x32xf32>
    %c0_45 = arith.constant 0 : index
    %c0_46 = arith.constant 0 : index
    %c0_47 = arith.constant 0 : index
    %126 = vector.load %arg8[%c0_45, %c0_46, %c0_47] : memref<2x1x32xf32, #tpu.memory_space<vmem>>, vector<1x1x32xf32>
    %127 = vector.shape_cast %126 : vector<1x1x32xf32> to vector<1x32xf32>
    %c0_48 = arith.constant 0 : index
    %c0_49 = arith.constant 0 : index
    %c0_50 = arith.constant 0 : index
    %128 = vector.load %arg9[%c0_48, %c0_49, %c0_50] : memref<2x1x32xf32, #tpu.memory_space<vmem>>, vector<1x1x32xf32>
    %129 = vector.shape_cast %128 : vector<1x1x32xf32> to vector<1x32xf32>
    %cst_51 = arith.constant dense<0.000000e+00> : vector<16xf32>
    %130 = vector.multi_reduction <add>, %125, %cst_51 [1] : vector<16x32xf32> to vector<16xf32>
    %131 = vector.shape_cast %130 : vector<16xf32> to vector<16x1xf32>
    %cst_52 = arith.constant 3.200000e+01 : f32
    %132 = vector.broadcast %cst_52 : f32 to vector<16x1xf32>
    %133 = arith.divf %131, %132 : vector<16x1xf32>
    %134 = vector.broadcast %133 : vector<16x1xf32> to vector<16x32xf32>
    %135 = arith.subf %125, %134 : vector<16x32xf32>
    %136 = vector.broadcast %133 : vector<16x1xf32> to vector<16x32xf32>
    %137 = arith.subf %125, %136 : vector<16x32xf32>
    %138 = arith.mulf %135, %137 : vector<16x32xf32>
    %cst_53 = arith.constant dense<0.000000e+00> : vector<16xf32>
    %139 = vector.multi_reduction <add>, %138, %cst_53 [1] : vector<16x32xf32> to vector<16xf32>
    %140 = vector.shape_cast %139 : vector<16xf32> to vector<16x1xf32>
    %cst_54 = arith.constant 3.200000e+01 : f32
    %141 = vector.broadcast %cst_54 : f32 to vector<16x1xf32>
    %142 = arith.divf %140, %141 : vector<16x1xf32>
    %143 = vector.broadcast %133 : vector<16x1xf32> to vector<16x32xf32>
    %144 = arith.subf %125, %143 : vector<16x32xf32>
    %cst_55 = arith.constant 9.99999996E-13 : f32
    %145 = vector.broadcast %cst_55 : f32 to vector<16x1xf32>
    %146 = arith.addf %142, %145 : vector<16x1xf32>
    %147 = math.rsqrt %146 : vector<16x1xf32>
    %148 = vector.broadcast %147 : vector<16x1xf32> to vector<16x32xf32>
    %149 = arith.mulf %144, %148 : vector<16x32xf32>
    %150 = vector.broadcast %127 : vector<1x32xf32> to vector<16x32xf32>
    %151 = arith.mulf %149, %150 : vector<16x32xf32>
    %152 = vector.broadcast %129 : vector<1x32xf32> to vector<16x32xf32>
    %153 = arith.addf %151, %152 : vector<16x32xf32>
    %c0_56 = arith.constant 0 : index
    %c0_57 = arith.constant 0 : index
    %c0_58 = arith.constant 0 : index
    %154 = vector.load %arg10[%c0_56, %c0_57, %c0_58] : memref<2x32x128xf32, #tpu.memory_space<vmem>>, vector<1x32x128xf32>
    %155 = vector.shape_cast %154 : vector<1x32x128xf32> to vector<32x128xf32>
    %cst_59 = arith.constant dense<0.000000e+00> : vector<16x128xf32>
    %156 = tpu.matmul %153, %155, %cst_59 {dimension_numbers = #tpu.dot_dimension_numbers<[1], [0], [0], [1], [0, 0, 1, 1], [], []>} : vector<16x32xf32>, vector<32x128xf32>, vector<16x128xf32> -> vector<16x128xf32>
    %c0_60 = arith.constant 0 : index
    %c0_61 = arith.constant 0 : index
    %c0_62 = arith.constant 0 : index
    %157 = vector.load %arg11[%c0_60, %c0_61, %c0_62] : memref<2x1x128xf32, #tpu.memory_space<vmem>>, vector<1x1x128xf32>
    %158 = vector.shape_cast %157 : vector<1x1x128xf32> to vector<1x128xf32>
    %159 = vector.broadcast %158 : vector<1x128xf32> to vector<16x128xf32>
    %160 = arith.addf %156, %159 : vector<16x128xf32>
    %cst_63 = arith.constant 5.000000e-01 : f32
    %161 = vector.broadcast %cst_63 : f32 to vector<16x128xf32>
    %162 = arith.mulf %161, %160 : vector<16x128xf32>
    %cst_64 = arith.constant 4.471500e-02 : f32
    %163 = vector.broadcast %cst_64 : f32 to vector<16x128xf32>
    %164 = arith.mulf %163, %160 : vector<16x128xf32>
    %165 = arith.mulf %164, %160 : vector<16x128xf32>
    %166 = arith.mulf %165, %160 : vector<16x128xf32>
    %167 = arith.addf %160, %166 : vector<16x128xf32>
    %cst_65 = arith.constant 0.797884583 : f32
    %168 = vector.broadcast %cst_65 : f32 to vector<16x128xf32>
    %169 = arith.mulf %168, %167 : vector<16x128xf32>
    %170 = math.tanh %169 : vector<16x128xf32>
    %cst_66 = arith.constant 1.000000e+00 : f32
    %171 = vector.broadcast %cst_66 : f32 to vector<16x128xf32>
    %172 = arith.addf %171, %170 : vector<16x128xf32>
    %173 = arith.mulf %162, %172 : vector<16x128xf32>
    %c0_67 = arith.constant 0 : index
    %c0_68 = arith.constant 0 : index
    %c0_69 = arith.constant 0 : index
    %174 = vector.load %arg12[%c0_67, %c0_68, %c0_69] : memref<2x128x32xf32, #tpu.memory_space<vmem>>, vector<1x128x32xf32>
    %175 = vector.shape_cast %174 : vector<1x128x32xf32> to vector<128x32xf32>
    %cst_70 = arith.constant dense<0.000000e+00> : vector<16x32xf32>
    %176 = tpu.matmul %173, %175, %cst_70 {dimension_numbers = #tpu.dot_dimension_numbers<[1], [0], [0], [1], [0, 0, 1, 1], [], []>} : vector<16x128xf32>, vector<128x32xf32>, vector<16x32xf32> -> vector<16x32xf32>
    %c0_71 = arith.constant 0 : index
    %c0_72 = arith.constant 0 : index
    %c0_73 = arith.constant 0 : index
    %177 = vector.load %arg13[%c0_71, %c0_72, %c0_73] : memref<2x1x32xf32, #tpu.memory_space<vmem>>, vector<1x1x32xf32>
    %178 = vector.shape_cast %177 : vector<1x1x32xf32> to vector<1x32xf32>
    %179 = vector.broadcast %178 : vector<1x32xf32> to vector<16x32xf32>
    %180 = arith.addf %176, %179 : vector<16x32xf32>
    %181 = arith.addf %180, %153 : vector<16x32xf32>
    %c0_74 = arith.constant 0 : index
    %c0_75 = arith.constant 0 : index
    %c0_76 = arith.constant 0 : index
    %182 = vector.load %arg14[%c0_74, %c0_75, %c0_76] : memref<2x1x32xf32, #tpu.memory_space<vmem>>, vector<1x1x32xf32>
    %183 = vector.shape_cast %182 : vector<1x1x32xf32> to vector<1x32xf32>
    %c0_77 = arith.constant 0 : index
    %c0_78 = arith.constant 0 : index
    %c0_79 = arith.constant 0 : index
    %184 = vector.load %arg15[%c0_77, %c0_78, %c0_79] : memref<2x1x32xf32, #tpu.memory_space<vmem>>, vector<1x1x32xf32>
    %185 = vector.shape_cast %184 : vector<1x1x32xf32> to vector<1x32xf32>
    %cst_80 = arith.constant dense<0.000000e+00> : vector<16xf32>
    %186 = vector.multi_reduction <add>, %181, %cst_80 [1] : vector<16x32xf32> to vector<16xf32>
    %187 = vector.shape_cast %186 : vector<16xf32> to vector<16x1xf32>
    %cst_81 = arith.constant 3.200000e+01 : f32
    %188 = vector.broadcast %cst_81 : f32 to vector<16x1xf32>
    %189 = arith.divf %187, %188 : vector<16x1xf32>
    %190 = vector.broadcast %189 : vector<16x1xf32> to vector<16x32xf32>
    %191 = arith.subf %181, %190 : vector<16x32xf32>
    %192 = vector.broadcast %189 : vector<16x1xf32> to vector<16x32xf32>
    %193 = arith.subf %181, %192 : vector<16x32xf32>
    %194 = arith.mulf %191, %193 : vector<16x32xf32>
    %cst_82 = arith.constant dense<0.000000e+00> : vector<16xf32>
    %195 = vector.multi_reduction <add>, %194, %cst_82 [1] : vector<16x32xf32> to vector<16xf32>
    %196 = vector.shape_cast %195 : vector<16xf32> to vector<16x1xf32>
    %cst_83 = arith.constant 3.200000e+01 : f32
    %197 = vector.broadcast %cst_83 : f32 to vector<16x1xf32>
    %198 = arith.divf %196, %197 : vector<16x1xf32>
    %199 = vector.broadcast %189 : vector<16x1xf32> to vector<16x32xf32>
    %200 = arith.subf %181, %199 : vector<16x32xf32>
    %cst_84 = arith.constant 9.99999996E-13 : f32
    %201 = vector.broadcast %cst_84 : f32 to vector<16x1xf32>
    %202 = arith.addf %198, %201 : vector<16x1xf32>
    %203 = math.rsqrt %202 : vector<16x1xf32>
    %204 = vector.broadcast %203 : vector<16x1xf32> to vector<16x32xf32>
    %205 = arith.mulf %200, %204 : vector<16x32xf32>
    %206 = vector.broadcast %183 : vector<1x32xf32> to vector<16x32xf32>
    %207 = arith.mulf %205, %206 : vector<16x32xf32>
    %208 = vector.broadcast %185 : vector<1x32xf32> to vector<16x32xf32>
    %209 = arith.addf %207, %208 : vector<16x32xf32>
    %c1 = arith.constant 1 : index
    %c0_85 = arith.constant 0 : index
    %c0_86 = arith.constant 0 : index
    %210 = vector.load %arg4[%c1, %c0_85, %c0_86] : memref<2x32x96xf32, #tpu.memory_space<vmem>>, vector<1x32x96xf32>
    %211 = vector.shape_cast %210 : vector<1x32x96xf32> to vector<32x96xf32>
    %cst_87 = arith.constant dense<0.000000e+00> : vector<16x96xf32>
    %212 = tpu.matmul %209, %211, %cst_87 {dimension_numbers = #tpu.dot_dimension_numbers<[1], [0], [0], [1], [0, 0, 1, 1], [], []>} : vector<16x32xf32>, vector<32x96xf32>, vector<16x96xf32> -> vector<16x96xf32>
    %c1_88 = arith.constant 1 : index
    %c0_89 = arith.constant 0 : index
    %c0_90 = arith.constant 0 : index
    %213 = vector.load %arg5[%c1_88, %c0_89, %c0_90] : memref<2x1x96xf32, #tpu.memory_space<vmem>>, vector<1x1x96xf32>
    %214 = vector.shape_cast %213 : vector<1x1x96xf32> to vector<1x96xf32>
    %215 = vector.broadcast %214 : vector<1x96xf32> to vector<16x96xf32>
    %216 = arith.addf %212, %215 : vector<16x96xf32>
    %217 = vector.shape_cast %216 : vector<16x96xf32> to vector<2x8x96xf32>
    %c1_91 = arith.constant 1 : index
    %c0_92 = arith.constant 0 : index
    %c0_93 = arith.constant 0 : index
    %218 = vector.load %arg6[%c1_91, %c0_92, %c0_93] : memref<2x32x32xf32, #tpu.memory_space<vmem>>, vector<1x32x32xf32>
    %219 = vector.shape_cast %218 : vector<1x32x32xf32> to vector<32x32xf32>
    %c1_94 = arith.constant 1 : index
    %c0_95 = arith.constant 0 : index
    %c0_96 = arith.constant 0 : index
    %220 = vector.load %arg7[%c1_94, %c0_95, %c0_96] : memref<2x1x32xf32, #tpu.memory_space<vmem>>, vector<1x1x32xf32>
    %221 = vector.shape_cast %220 : vector<1x1x32xf32> to vector<1x32xf32>
    %222 = vector.extract_strided_slice %217 {offsets = [0, 0, 0], sizes = [2, 8, 8], strides = [1, 1, 1]} : vector<2x8x96xf32> to vector<2x8x8xf32>
    %223 = vector.extract_strided_slice %217 {offsets = [0, 0, 32], sizes = [2, 8, 8], strides = [1, 1, 1]} : vector<2x8x96xf32> to vector<2x8x8xf32>
    %224 = vector.extract_strided_slice %217 {offsets = [0, 0, 64], sizes = [2, 8, 8], strides = [1, 1, 1]} : vector<2x8x96xf32> to vector<2x8x8xf32>
    "tpu.trace_start"() <{level = 10 : i32, message = "bqd,bkd->bqk"}> : () -> ()
    %cst_97 = arith.constant dense<0.000000e+00> : vector<2x8x8xf32>
    %225 = tpu.matmul %222, %223, %cst_97 {dimension_numbers = #tpu.dot_dimension_numbers<[2], [2], [1], [1], [0, 0, 0, 1, 1, 1], [0], [0]>} : vector<2x8x8xf32>, vector<2x8x8xf32>, vector<2x8x8xf32> -> vector<2x8x8xf32>
    "tpu.trace_stop"() : () -> ()
    %226 = vector.broadcast %27 : vector<2x1x8xf32> to vector<2x8x8xf32>
    %227 = arith.addf %225, %226 : vector<2x8x8xf32>
    %cst_98 = arith.constant dense<0xFF800000> : vector<2x8xf32>
    %228 = vector.multi_reduction <maximumf>, %227, %cst_98 [2] : vector<2x8x8xf32> to vector<2x8xf32>
    %229 = vector.shape_cast %228 : vector<2x8xf32> to vector<2x8x1xf32>
    %230 = vector.broadcast %229 : vector<2x8x1xf32> to vector<2x8x8xf32>
    %231 = arith.subf %227, %230 : vector<2x8x8xf32>
    %232 = math.exp %231 : vector<2x8x8xf32>
    %cst_99 = arith.constant dense<0.000000e+00> : vector<2x8xf32>
    %233 = vector.multi_reduction <add>, %232, %cst_99 [2] : vector<2x8x8xf32> to vector<2x8xf32>
    %234 = vector.shape_cast %233 : vector<2x8xf32> to vector<2x8x1xf32>
    %235 = tpu.reciprocal %234 {approx = true} : vector<2x8x1xf32> -> vector<2x8x1xf32>
    %236 = vector.broadcast %235 : vector<2x8x1xf32> to vector<2x8x8xf32>
    %237 = arith.mulf %232, %236 : vector<2x8x8xf32>
    "tpu.trace_start"() <{level = 10 : i32, message = "bqk,bkd->bqd"}> : () -> ()
    %cst_100 = arith.constant dense<0.000000e+00> : vector<2x8x8xf32>
    %238 = tpu.matmul %237, %224, %cst_100 {dimension_numbers = #tpu.dot_dimension_numbers<[2], [1], [1], [2], [0, 0, 0, 1, 1, 2], [0], [0]>} : vector<2x8x8xf32>, vector<2x8x8xf32>, vector<2x8x8xf32> -> vector<2x8x8xf32>
    "tpu.trace_stop"() : () -> ()
    %239 = vector.shape_cast %238 : vector<2x8x8xf32> to vector<16x8xf32>
    %240 = vector.extract_strided_slice %219 {offsets = [0, 0], sizes = [8, 32], strides = [1, 1]} : vector<32x32xf32> to vector<8x32xf32>
    %cst_101 = arith.constant dense<0.000000e+00> : vector<16x32xf32>
    %241 = tpu.matmul %239, %240, %cst_101 {dimension_numbers = #tpu.dot_dimension_numbers<[1], [0], [0], [1], [0, 0, 1, 1], [], []>} : vector<16x8xf32>, vector<8x32xf32>, vector<16x32xf32> -> vector<16x32xf32>
    %242 = vector.broadcast %221 : vector<1x32xf32> to vector<16x32xf32>
    %243 = arith.addf %242, %241 : vector<16x32xf32>
    %244 = vector.extract_strided_slice %217 {offsets = [0, 0, 8], sizes = [2, 8, 8], strides = [1, 1, 1]} : vector<2x8x96xf32> to vector<2x8x8xf32>
    %245 = vector.extract_strided_slice %217 {offsets = [0, 0, 40], sizes = [2, 8, 8], strides = [1, 1, 1]} : vector<2x8x96xf32> to vector<2x8x8xf32>
    %246 = vector.extract_strided_slice %217 {offsets = [0, 0, 72], sizes = [2, 8, 8], strides = [1, 1, 1]} : vector<2x8x96xf32> to vector<2x8x8xf32>
    "tpu.trace_start"() <{level = 10 : i32, message = "bqd,bkd->bqk"}> : () -> ()
    %cst_102 = arith.constant dense<0.000000e+00> : vector<2x8x8xf32>
    %247 = tpu.matmul %244, %245, %cst_102 {dimension_numbers = #tpu.dot_dimension_numbers<[2], [2], [1], [1], [0, 0, 0, 1, 1, 1], [0], [0]>} : vector<2x8x8xf32>, vector<2x8x8xf32>, vector<2x8x8xf32> -> vector<2x8x8xf32>
    "tpu.trace_stop"() : () -> ()
    %248 = vector.broadcast %27 : vector<2x1x8xf32> to vector<2x8x8xf32>
    %249 = arith.addf %247, %248 : vector<2x8x8xf32>
    %cst_103 = arith.constant dense<0xFF800000> : vector<2x8xf32>
    %250 = vector.multi_reduction <maximumf>, %249, %cst_103 [2] : vector<2x8x8xf32> to vector<2x8xf32>
    %251 = vector.shape_cast %250 : vector<2x8xf32> to vector<2x8x1xf32>
    %252 = vector.broadcast %251 : vector<2x8x1xf32> to vector<2x8x8xf32>
    %253 = arith.subf %249, %252 : vector<2x8x8xf32>
    %254 = math.exp %253 : vector<2x8x8xf32>
    %cst_104 = arith.constant dense<0.000000e+00> : vector<2x8xf32>
    %255 = vector.multi_reduction <add>, %254, %cst_104 [2] : vector<2x8x8xf32> to vector<2x8xf32>
    %256 = vector.shape_cast %255 : vector<2x8xf32> to vector<2x8x1xf32>
    %257 = tpu.reciprocal %256 {approx = true} : vector<2x8x1xf32> -> vector<2x8x1xf32>
    %258 = vector.broadcast %257 : vector<2x8x1xf32> to vector<2x8x8xf32>
    %259 = arith.mulf %254, %258 : vector<2x8x8xf32>
    "tpu.trace_start"() <{level = 10 : i32, message = "bqk,bkd->bqd"}> : () -> ()
    %cst_105 = arith.constant dense<0.000000e+00> : vector<2x8x8xf32>
    %260 = tpu.matmul %259, %246, %cst_105 {dimension_numbers = #tpu.dot_dimension_numbers<[2], [1], [1], [2], [0, 0, 0, 1, 1, 2], [0], [0]>} : vector<2x8x8xf32>, vector<2x8x8xf32>, vector<2x8x8xf32> -> vector<2x8x8xf32>
    "tpu.trace_stop"() : () -> ()
    %261 = vector.shape_cast %260 : vector<2x8x8xf32> to vector<16x8xf32>
    %262 = vector.extract_strided_slice %219 {offsets = [8, 0], sizes = [8, 32], strides = [1, 1]} : vector<32x32xf32> to vector<8x32xf32>
    %cst_106 = arith.constant dense<0.000000e+00> : vector<16x32xf32>
    %263 = tpu.matmul %261, %262, %cst_106 {dimension_numbers = #tpu.dot_dimension_numbers<[1], [0], [0], [1], [0, 0, 1, 1], [], []>} : vector<16x8xf32>, vector<8x32xf32>, vector<16x32xf32> -> vector<16x32xf32>
    %264 = arith.addf %243, %263 : vector<16x32xf32>
    %265 = vector.extract_strided_slice %217 {offsets = [0, 0, 16], sizes = [2, 8, 8], strides = [1, 1, 1]} : vector<2x8x96xf32> to vector<2x8x8xf32>
    %266 = vector.extract_strided_slice %217 {offsets = [0, 0, 48], sizes = [2, 8, 8], strides = [1, 1, 1]} : vector<2x8x96xf32> to vector<2x8x8xf32>
    %267 = vector.extract_strided_slice %217 {offsets = [0, 0, 80], sizes = [2, 8, 8], strides = [1, 1, 1]} : vector<2x8x96xf32> to vector<2x8x8xf32>
    "tpu.trace_start"() <{level = 10 : i32, message = "bqd,bkd->bqk"}> : () -> ()
    %cst_107 = arith.constant dense<0.000000e+00> : vector<2x8x8xf32>
    %268 = tpu.matmul %265, %266, %cst_107 {dimension_numbers = #tpu.dot_dimension_numbers<[2], [2], [1], [1], [0, 0, 0, 1, 1, 1], [0], [0]>} : vector<2x8x8xf32>, vector<2x8x8xf32>, vector<2x8x8xf32> -> vector<2x8x8xf32>
    "tpu.trace_stop"() : () -> ()
    %269 = vector.broadcast %27 : vector<2x1x8xf32> to vector<2x8x8xf32>
    %270 = arith.addf %268, %269 : vector<2x8x8xf32>
    %cst_108 = arith.constant dense<0xFF800000> : vector<2x8xf32>
    %271 = vector.multi_reduction <maximumf>, %270, %cst_108 [2] : vector<2x8x8xf32> to vector<2x8xf32>
    %272 = vector.shape_cast %271 : vector<2x8xf32> to vector<2x8x1xf32>
    %273 = vector.broadcast %272 : vector<2x8x1xf32> to vector<2x8x8xf32>
    %274 = arith.subf %270, %273 : vector<2x8x8xf32>
    %275 = math.exp %274 : vector<2x8x8xf32>
    %cst_109 = arith.constant dense<0.000000e+00> : vector<2x8xf32>
    %276 = vector.multi_reduction <add>, %275, %cst_109 [2] : vector<2x8x8xf32> to vector<2x8xf32>
    %277 = vector.shape_cast %276 : vector<2x8xf32> to vector<2x8x1xf32>
    %278 = tpu.reciprocal %277 {approx = true} : vector<2x8x1xf32> -> vector<2x8x1xf32>
    %279 = vector.broadcast %278 : vector<2x8x1xf32> to vector<2x8x8xf32>
    %280 = arith.mulf %275, %279 : vector<2x8x8xf32>
    "tpu.trace_start"() <{level = 10 : i32, message = "bqk,bkd->bqd"}> : () -> ()
    %cst_110 = arith.constant dense<0.000000e+00> : vector<2x8x8xf32>
    %281 = tpu.matmul %280, %267, %cst_110 {dimension_numbers = #tpu.dot_dimension_numbers<[2], [1], [1], [2], [0, 0, 0, 1, 1, 2], [0], [0]>} : vector<2x8x8xf32>, vector<2x8x8xf32>, vector<2x8x8xf32> -> vector<2x8x8xf32>
    "tpu.trace_stop"() : () -> ()
    %282 = vector.shape_cast %281 : vector<2x8x8xf32> to vector<16x8xf32>
    %283 = vector.extract_strided_slice %219 {offsets = [16, 0], sizes = [8, 32], strides = [1, 1]} : vector<32x32xf32> to vector<8x32xf32>
    %cst_111 = arith.constant dense<0.000000e+00> : vector<16x32xf32>
    %284 = tpu.matmul %282, %283, %cst_111 {dimension_numbers = #tpu.dot_dimension_numbers<[1], [0], [0], [1], [0, 0, 1, 1], [], []>} : vector<16x8xf32>, vector<8x32xf32>, vector<16x32xf32> -> vector<16x32xf32>
    %285 = arith.addf %264, %284 : vector<16x32xf32>
    %286 = vector.extract_strided_slice %217 {offsets = [0, 0, 24], sizes = [2, 8, 8], strides = [1, 1, 1]} : vector<2x8x96xf32> to vector<2x8x8xf32>
    %287 = vector.extract_strided_slice %217 {offsets = [0, 0, 56], sizes = [2, 8, 8], strides = [1, 1, 1]} : vector<2x8x96xf32> to vector<2x8x8xf32>
    %288 = vector.extract_strided_slice %217 {offsets = [0, 0, 88], sizes = [2, 8, 8], strides = [1, 1, 1]} : vector<2x8x96xf32> to vector<2x8x8xf32>
    "tpu.trace_start"() <{level = 10 : i32, message = "bqd,bkd->bqk"}> : () -> ()
    %cst_112 = arith.constant dense<0.000000e+00> : vector<2x8x8xf32>
    %289 = tpu.matmul %286, %287, %cst_112 {dimension_numbers = #tpu.dot_dimension_numbers<[2], [2], [1], [1], [0, 0, 0, 1, 1, 1], [0], [0]>} : vector<2x8x8xf32>, vector<2x8x8xf32>, vector<2x8x8xf32> -> vector<2x8x8xf32>
    "tpu.trace_stop"() : () -> ()
    %290 = vector.broadcast %27 : vector<2x1x8xf32> to vector<2x8x8xf32>
    %291 = arith.addf %289, %290 : vector<2x8x8xf32>
    %cst_113 = arith.constant dense<0xFF800000> : vector<2x8xf32>
    %292 = vector.multi_reduction <maximumf>, %291, %cst_113 [2] : vector<2x8x8xf32> to vector<2x8xf32>
    %293 = vector.shape_cast %292 : vector<2x8xf32> to vector<2x8x1xf32>
    %294 = vector.broadcast %293 : vector<2x8x1xf32> to vector<2x8x8xf32>
    %295 = arith.subf %291, %294 : vector<2x8x8xf32>
    %296 = math.exp %295 : vector<2x8x8xf32>
    %cst_114 = arith.constant dense<0.000000e+00> : vector<2x8xf32>
    %297 = vector.multi_reduction <add>, %296, %cst_114 [2] : vector<2x8x8xf32> to vector<2x8xf32>
    %298 = vector.shape_cast %297 : vector<2x8xf32> to vector<2x8x1xf32>
    %299 = tpu.reciprocal %298 {approx = true} : vector<2x8x1xf32> -> vector<2x8x1xf32>
    %300 = vector.broadcast %299 : vector<2x8x1xf32> to vector<2x8x8xf32>
    %301 = arith.mulf %296, %300 : vector<2x8x8xf32>
    "tpu.trace_start"() <{level = 10 : i32, message = "bqk,bkd->bqd"}> : () -> ()
    %cst_115 = arith.constant dense<0.000000e+00> : vector<2x8x8xf32>
    %302 = tpu.matmul %301, %288, %cst_115 {dimension_numbers = #tpu.dot_dimension_numbers<[2], [1], [1], [2], [0, 0, 0, 1, 1, 2], [0], [0]>} : vector<2x8x8xf32>, vector<2x8x8xf32>, vector<2x8x8xf32> -> vector<2x8x8xf32>
    "tpu.trace_stop"() : () -> ()
    %303 = vector.shape_cast %302 : vector<2x8x8xf32> to vector<16x8xf32>
    %304 = vector.extract_strided_slice %219 {offsets = [24, 0], sizes = [8, 32], strides = [1, 1]} : vector<32x32xf32> to vector<8x32xf32>
    %cst_116 = arith.constant dense<0.000000e+00> : vector<16x32xf32>
    %305 = tpu.matmul %303, %304, %cst_116 {dimension_numbers = #tpu.dot_dimension_numbers<[1], [0], [0], [1], [0, 0, 1, 1], [], []>} : vector<16x8xf32>, vector<8x32xf32>, vector<16x32xf32> -> vector<16x32xf32>
    %306 = arith.addf %285, %305 : vector<16x32xf32>
    %307 = arith.addf %306, %209 : vector<16x32xf32>
    %c1_117 = arith.constant 1 : index
    %c0_118 = arith.constant 0 : index
    %c0_119 = arith.constant 0 : index
    %308 = vector.load %arg8[%c1_117, %c0_118, %c0_119] : memref<2x1x32xf32, #tpu.memory_space<vmem>>, vector<1x1x32xf32>
    %309 = vector.shape_cast %308 : vector<1x1x32xf32> to vector<1x32xf32>
    %c1_120 = arith.constant 1 : index
    %c0_121 = arith.constant 0 : index
    %c0_122 = arith.constant 0 : index
    %310 = vector.load %arg9[%c1_120, %c0_121, %c0_122] : memref<2x1x32xf32, #tpu.memory_space<vmem>>, vector<1x1x32xf32>
    %311 = vector.shape_cast %310 : vector<1x1x32xf32> to vector<1x32xf32>
    %cst_123 = arith.constant dense<0.000000e+00> : vector<16xf32>
    %312 = vector.multi_reduction <add>, %307, %cst_123 [1] : vector<16x32xf32> to vector<16xf32>
    %313 = vector.shape_cast %312 : vector<16xf32> to vector<16x1xf32>
    %cst_124 = arith.constant 3.200000e+01 : f32
    %314 = vector.broadcast %cst_124 : f32 to vector<16x1xf32>
    %315 = arith.divf %313, %314 : vector<16x1xf32>
    %316 = vector.broadcast %315 : vector<16x1xf32> to vector<16x32xf32>
    %317 = arith.subf %307, %316 : vector<16x32xf32>
    %318 = vector.broadcast %315 : vector<16x1xf32> to vector<16x32xf32>
    %319 = arith.subf %307, %318 : vector<16x32xf32>
    %320 = arith.mulf %317, %319 : vector<16x32xf32>
    %cst_125 = arith.constant dense<0.000000e+00> : vector<16xf32>
    %321 = vector.multi_reduction <add>, %320, %cst_125 [1] : vector<16x32xf32> to vector<16xf32>
    %322 = vector.shape_cast %321 : vector<16xf32> to vector<16x1xf32>
    %cst_126 = arith.constant 3.200000e+01 : f32
    %323 = vector.broadcast %cst_126 : f32 to vector<16x1xf32>
    %324 = arith.divf %322, %323 : vector<16x1xf32>
    %325 = vector.broadcast %315 : vector<16x1xf32> to vector<16x32xf32>
    %326 = arith.subf %307, %325 : vector<16x32xf32>
    %cst_127 = arith.constant 9.99999996E-13 : f32
    %327 = vector.broadcast %cst_127 : f32 to vector<16x1xf32>
    %328 = arith.addf %324, %327 : vector<16x1xf32>
    %329 = math.rsqrt %328 : vector<16x1xf32>
    %330 = vector.broadcast %329 : vector<16x1xf32> to vector<16x32xf32>
    %331 = arith.mulf %326, %330 : vector<16x32xf32>
    %332 = vector.broadcast %309 : vector<1x32xf32> to vector<16x32xf32>
    %333 = arith.mulf %331, %332 : vector<16x32xf32>
    %334 = vector.broadcast %311 : vector<1x32xf32> to vector<16x32xf32>
    %335 = arith.addf %333, %334 : vector<16x32xf32>
    %c1_128 = arith.constant 1 : index
    %c0_129 = arith.constant 0 : index
    %c0_130 = arith.constant 0 : index
    %336 = vector.load %arg10[%c1_128, %c0_129, %c0_130] : memref<2x32x128xf32, #tpu.memory_space<vmem>>, vector<1x32x128xf32>
    %337 = vector.shape_cast %336 : vector<1x32x128xf32> to vector<32x128xf32>
    %cst_131 = arith.constant dense<0.000000e+00> : vector<16x128xf32>
    %338 = tpu.matmul %335, %337, %cst_131 {dimension_numbers = #tpu.dot_dimension_numbers<[1], [0], [0], [1], [0, 0, 1, 1], [], []>} : vector<16x32xf32>, vector<32x128xf32>, vector<16x128xf32> -> vector<16x128xf32>
    %c1_132 = arith.constant 1 : index
    %c0_133 = arith.constant 0 : index
    %c0_134 = arith.constant 0 : index
    %339 = vector.load %arg11[%c1_132, %c0_133, %c0_134] : memref<2x1x128xf32, #tpu.memory_space<vmem>>, vector<1x1x128xf32>
    %340 = vector.shape_cast %339 : vector<1x1x128xf32> to vector<1x128xf32>
    %341 = vector.broadcast %340 : vector<1x128xf32> to vector<16x128xf32>
    %342 = arith.addf %338, %341 : vector<16x128xf32>
    %cst_135 = arith.constant 5.000000e-01 : f32
    %343 = vector.broadcast %cst_135 : f32 to vector<16x128xf32>
    %344 = arith.mulf %343, %342 : vector<16x128xf32>
    %cst_136 = arith.constant 4.471500e-02 : f32
    %345 = vector.broadcast %cst_136 : f32 to vector<16x128xf32>
    %346 = arith.mulf %345, %342 : vector<16x128xf32>
    %347 = arith.mulf %346, %342 : vector<16x128xf32>
    %348 = arith.mulf %347, %342 : vector<16x128xf32>
    %349 = arith.addf %342, %348 : vector<16x128xf32>
    %cst_137 = arith.constant 0.797884583 : f32
    %350 = vector.broadcast %cst_137 : f32 to vector<16x128xf32>
    %351 = arith.mulf %350, %349 : vector<16x128xf32>
    %352 = math.tanh %351 : vector<16x128xf32>
    %cst_138 = arith.constant 1.000000e+00 : f32
    %353 = vector.broadcast %cst_138 : f32 to vector<16x128xf32>
    %354 = arith.addf %353, %352 : vector<16x128xf32>
    %355 = arith.mulf %344, %354 : vector<16x128xf32>
    %c1_139 = arith.constant 1 : index
    %c0_140 = arith.constant 0 : index
    %c0_141 = arith.constant 0 : index
    %356 = vector.load %arg12[%c1_139, %c0_140, %c0_141] : memref<2x128x32xf32, #tpu.memory_space<vmem>>, vector<1x128x32xf32>
    %357 = vector.shape_cast %356 : vector<1x128x32xf32> to vector<128x32xf32>
    %cst_142 = arith.constant dense<0.000000e+00> : vector<16x32xf32>
    %358 = tpu.matmul %355, %357, %cst_142 {dimension_numbers = #tpu.dot_dimension_numbers<[1], [0], [0], [1], [0, 0, 1, 1], [], []>} : vector<16x128xf32>, vector<128x32xf32>, vector<16x32xf32> -> vector<16x32xf32>
    %c1_143 = arith.constant 1 : index
    %c0_144 = arith.constant 0 : index
    %c0_145 = arith.constant 0 : index
    %359 = vector.load %arg13[%c1_143, %c0_144, %c0_145] : memref<2x1x32xf32, #tpu.memory_space<vmem>>, vector<1x1x32xf32>
    %360 = vector.shape_cast %359 : vector<1x1x32xf32> to vector<1x32xf32>
    %361 = vector.broadcast %360 : vector<1x32xf32> to vector<16x32xf32>
    %362 = arith.addf %358, %361 : vector<16x32xf32>
    %363 = arith.addf %362, %335 : vector<16x32xf32>
    %c1_146 = arith.constant 1 : index
    %c0_147 = arith.constant 0 : index
    %c0_148 = arith.constant 0 : index
    %364 = vector.load %arg14[%c1_146, %c0_147, %c0_148] : memref<2x1x32xf32, #tpu.memory_space<vmem>>, vector<1x1x32xf32>
    %365 = vector.shape_cast %364 : vector<1x1x32xf32> to vector<1x32xf32>
    %c1_149 = arith.constant 1 : index
    %c0_150 = arith.constant 0 : index
    %c0_151 = arith.constant 0 : index
    %366 = vector.load %arg15[%c1_149, %c0_150, %c0_151] : memref<2x1x32xf32, #tpu.memory_space<vmem>>, vector<1x1x32xf32>
    %367 = vector.shape_cast %366 : vector<1x1x32xf32> to vector<1x32xf32>
    %cst_152 = arith.constant dense<0.000000e+00> : vector<16xf32>
    %368 = vector.multi_reduction <add>, %363, %cst_152 [1] : vector<16x32xf32> to vector<16xf32>
    %369 = vector.shape_cast %368 : vector<16xf32> to vector<16x1xf32>
    %cst_153 = arith.constant 3.200000e+01 : f32
    %370 = vector.broadcast %cst_153 : f32 to vector<16x1xf32>
    %371 = arith.divf %369, %370 : vector<16x1xf32>
    %372 = vector.broadcast %371 : vector<16x1xf32> to vector<16x32xf32>
    %373 = arith.subf %363, %372 : vector<16x32xf32>
    %374 = vector.broadcast %371 : vector<16x1xf32> to vector<16x32xf32>
    %375 = arith.subf %363, %374 : vector<16x32xf32>
    %376 = arith.mulf %373, %375 : vector<16x32xf32>
    %cst_154 = arith.constant dense<0.000000e+00> : vector<16xf32>
    %377 = vector.multi_reduction <add>, %376, %cst_154 [1] : vector<16x32xf32> to vector<16xf32>
    %378 = vector.shape_cast %377 : vector<16xf32> to vector<16x1xf32>
    %cst_155 = arith.constant 3.200000e+01 : f32
    %379 = vector.broadcast %cst_155 : f32 to vector<16x1xf32>
    %380 = arith.divf %378, %379 : vector<16x1xf32>
    %381 = vector.broadcast %371 : vector<16x1xf32> to vector<16x32xf32>
    %382 = arith.subf %363, %381 : vector<16x32xf32>
    %cst_156 = arith.constant 9.99999996E-13 : f32
    %383 = vector.broadcast %cst_156 : f32 to vector<16x1xf32>
    %384 = arith.addf %380, %383 : vector<16x1xf32>
    %385 = math.rsqrt %384 : vector<16x1xf32>
    %386 = vector.broadcast %385 : vector<16x1xf32> to vector<16x32xf32>
    %387 = arith.mulf %382, %386 : vector<16x32xf32>
    %388 = vector.broadcast %365 : vector<1x32xf32> to vector<16x32xf32>
    %389 = arith.mulf %387, %388 : vector<16x32xf32>
    %390 = vector.broadcast %367 : vector<1x32xf32> to vector<16x32xf32>
    %391 = arith.addf %389, %390 : vector<16x32xf32>
    %c0_157 = arith.constant 0 : index
    %c0_158 = arith.constant 0 : index
    %392 = vector.load %arg16[%c0_157, %c0_158] : memref<32x32xf32, #tpu.memory_space<vmem>>, vector<32x32xf32>
    %cst_159 = arith.constant dense<0.000000e+00> : vector<16x32xf32>
    %393 = tpu.matmul %391, %392, %cst_159 {dimension_numbers = #tpu.dot_dimension_numbers<[1], [0], [0], [1], [0, 0, 1, 1], [], []>} : vector<16x32xf32>, vector<32x32xf32>, vector<16x32xf32> -> vector<16x32xf32>
    %c0_160 = arith.constant 0 : index
    %c0_161 = arith.constant 0 : index
    %394 = vector.load %arg17[%c0_160, %c0_161] : memref<1x32xf32, #tpu.memory_space<vmem>>, vector<1x32xf32>
    %395 = vector.broadcast %394 : vector<1x32xf32> to vector<16x32xf32>
    %396 = arith.addf %393, %395 : vector<16x32xf32>
    %397 = math.tanh %396 : vector<16x32xf32>
    %c0_162 = arith.constant 0 : index
    %c0_163 = arith.constant 0 : index
    %398 = vector.load %arg18[%c0_162, %c0_163] : memref<32x128xf32, #tpu.memory_space<vmem>>, vector<32x128xf32>
    %cst_164 = arith.constant dense<0.000000e+00> : vector<16x128xf32>
    %399 = tpu.matmul %397, %398, %cst_164 {dimension_numbers = #tpu.dot_dimension_numbers<[1], [0], [0], [1], [0, 0, 1, 1], [], []>} : vector<16x32xf32>, vector<32x128xf32>, vector<16x128xf32> -> vector<16x128xf32>
    %c0_165 = arith.constant 0 : index
    %c0_166 = arith.constant 0 : index
    %400 = vector.load %arg19[%c0_165, %c0_166] : memref<1x128xf32, #tpu.memory_space<vmem>>, vector<1x128xf32>
    %401 = vector.broadcast %400 : vector<1x128xf32> to vector<16x128xf32>
    %402 = arith.addf %399, %401 : vector<16x128xf32>
    %cst_167 = arith.constant 0.000000e+00 : f32
    %403 = vector.broadcast %cst_167 : f32 to vector<16x128xf32>
    %404 = arith.maximumf %402, %403 : vector<16x128xf32>
    %c0_168 = arith.constant 0 : index
    %c0_169 = arith.constant 0 : index
    %405 = vector.load %arg20[%c0_168, %c0_169] : memref<16x128xf32, #tpu.memory_space<vmem>>, vector<16x128xf32>
    tpu.vector_store %arg20[%c0_168, %c0_169], %404 {strides = array<i32>} : memref<16x128xf32, #tpu.memory_space<vmem>>, vector<16x128xf32>,
    return
  }
}

</mosaic_0001>

<llo_original>
// kernel: bert_classifier_forward.1
$region0: #{bert_classifier_forward.1}
  #allocation0 [shape = 'u32[]', space=smem, size = 0x4, offset = 0x4, fixed_abs, tag = 'smem constant byte address 0x4 - core index']
  #allocation1 [shape = 'u32[72,128]{1,0:T(1,128)}', space=vmem, size = 0x9000, scoped, tag = 'internal scratch']
  %s0 = inlined_call_operand.vmem [shape: f32[16,32], index: 0, kind: input, shape index: {}]
  %s1 = inlined_call_operand.vmem [shape: f32[2,1,8], index: 1, kind: input, shape index: {}]
  %s2 = inlined_call_operand.vmem [shape: f32[1,32], index: 2, kind: input, shape index: {}]
  %s3 = inlined_call_operand.vmem [shape: f32[1,32], index: 3, kind: input, shape index: {}]
  %s4 = inlined_call_operand.vmem [shape: f32[2,32,96], index: 4, kind: input, shape index: {}]
  %s5 = inlined_call_operand.vmem [shape: f32[2,1,96], index: 5, kind: input, shape index: {}]
  %s6 = inlined_call_operand.vmem [shape: f32[2,32,32], index: 6, kind: input, shape index: {}]
  %s7 = inlined_call_operand.vmem [shape: f32[2,1,32], index: 7, kind: input, shape index: {}]
  %s8 = inlined_call_operand.vmem [shape: f32[2,1,32], index: 8, kind: input, shape index: {}]
  %s9 = inlined_call_operand.vmem [shape: f32[2,1,32], index: 9, kind: input, shape index: {}]
  %s10 = inlined_call_operand.vmem [shape: f32[2,32,128], index: 10, kind: input, shape index: {}]
  %s11 = inlined_call_operand.vmem [shape: f32[2,1,128], index: 11, kind: input, shape index: {}]
  %s12 = inlined_call_operand.vmem [shape: f32[2,128,32], index: 12, kind: input, shape index: {}]
  %s13 = inlined_call_operand.vmem [shape: f32[2,1,32], index: 13, kind: input, shape index: {}]
  %s14 = inlined_call_operand.vmem [shape: f32[2,1,32], index: 14, kind: input, shape index: {}]
  %s15 = inlined_call_operand.vmem [shape: f32[2,1,32], index: 15, kind: input, shape index: {}]
  %s16 = inlined_call_operand.vmem [shape: f32[32,32], index: 16, kind: input, shape index: {}]
  %s17 = inlined_call_operand.vmem [shape: f32[1,32], index: 17, kind: input, shape index: {}]
  %s18 = inlined_call_operand.vmem [shape: f32[32,128], index: 18, kind: input, shape index: {}]
  %s19 = inlined_call_operand.vmem [shape: f32[1,128], index: 19, kind: input, shape index: {}]
  %s20 = inlined_call_operand.vmem [shape: f32[16,128], index: 20, kind: output, shape index: {}]
  %s21 = sld [smem:[#allocation0]]
  $region90: #{bert_classifier_forward.1} parent=0
    _
  %s23 = ssub.s32 1, %s21
  %s24 = scalar_select 0, %s23, %s21
  // Predicated region
  $region2: #{bert_classifier_forward.1} parent=0 // pred_check
    _
  $region3: #{bert_classifier_forward.1} parent=0 // pred_check_branch
    %26 = sbr.rel (0) target = $region5
  $region4: #{bert_classifier_forward.1} parent=0 // pred_region
    _
  $region5: #{bert_classifier_forward.1} parent=0 // pred_fallthru
    _
  // Predicated region
  $region6: #{bert_classifier_forward.1} parent=0 // pred_check
    _
  $region7: #{bert_classifier_forward.1} parent=0 // pred_check_branch
    %28 = sbr.rel (0) target = $region9
  $region8: #{bert_classifier_forward.1} parent=0 // pred_region
    _
  $region9: #{bert_classifier_forward.1} parent=0 // pred_fallthru
    _
  // Predicated region
  $region10: #{bert_classifier_forward.1} parent=0 // pred_check
    _
  $region11: #{bert_classifier_forward.1} parent=0 // pred_check_branch
    %30 = sbr.rel (0) target = $region13
  $region12: #{bert_classifier_forward.1} parent=0 // pred_region
    _
  $region13: #{bert_classifier_forward.1} parent=0 // pred_fallthru
    _
  // Predicated region
  $region14: #{bert_classifier_forward.1} parent=0 // pred_check
    _
  $region15: #{bert_classifier_forward.1} parent=0 // pred_check_branch
    %32 = sbr.rel (0) target = $region17
  $region16: #{bert_classifier_forward.1} parent=0 // pred_region
    _
  $region17: #{bert_classifier_forward.1} parent=0 // pred_fallthru
    _
  // Predicated region
  $region18: #{bert_classifier_forward.1} parent=0 // pred_check
    _
  $region19: #{bert_classifier_forward.1} parent=0 // pred_check_branch
    %34 = sbr.rel (0) target = $region21
  $region20: #{bert_classifier_forward.1} parent=0 // pred_region
    _
  $region21: #{bert_classifier_forward.1} parent=0 // pred_fallthru
    _
  // Predicated region
  $region22: #{bert_classifier_forward.1} parent=0 // pred_check
    _
  $region23: #{bert_classifier_forward.1} parent=0 // pred_check_branch
    %36 = sbr.rel (0) target = $region25
  $region24: #{bert_classifier_forward.1} parent=0 // pred_region
    _
  $region25: #{bert_classifier_forward.1} parent=0 // pred_fallthru
    _
  // Predicated region
  $region26: #{bert_classifier_forward.1} parent=0 // pred_check
    _
  $region27: #{bert_classifier_forward.1} parent=0 // pred_check_branch
    %38 = sbr.rel (0) target = $region29
  $region28: #{bert_classifier_forward.1} parent=0 // pred_region
    _
  $region29: #{bert_classifier_forward.1} parent=0 // pred_fallthru
    _
  // Predicated region
  $region30: #{bert_classifier_forward.1} parent=0 // pred_check
    _
  $region31: #{bert_classifier_forward.1} parent=0 // pred_check_branch
    %40 = sbr.rel (0) target = $region33
  $region32: #{bert_classifier_forward.1} parent=0 // pred_region
    _
  $region33: #{bert_classifier_forward.1} parent=0 // pred_fallthru
    _
  // Predicated region
  $region34: #{bert_classifier_forward.1} parent=0 // pred_check
    _
  $region35: #{bert_classifier_forward.1} parent=0 // pred_check_branch
    %42 = sbr.rel (0) target = $region37
  $region36: #{bert_classifier_forward.1} parent=0 // pred_region
    _
  $region37: #{bert_classifier_forward.1} parent=0 // pred_fallthru
    _
  // Predicated region
  $region38: #{bert_classifier_forward.1} parent=0 // pred_check
    _
  $region39: #{bert_classifier_forward.1} parent=0 // pred_check_branch
    %44 = sbr.rel (0) target = $region41
  $region40: #{bert_classifier_forward.1} parent=0 // pred_region
    _
  $region41: #{bert_classifier_forward.1} parent=0 // pred_fallthru
    _
  // Predicated region
  $region42: #{bert_classifier_forward.1} parent=0 // pred_check
    _
  $region43: #{bert_classifier_forward.1} parent=0 // pred_check_branch
    %46 = sbr.rel (0) target = $region45
  $region44: #{bert_classifier_forward.1} parent=0 // pred_region
    _
  $region45: #{bert_classifier_forward.1} parent=0 // pred_fallthru
    _
  // Predicated region
  $region46: #{bert_classifier_forward.1} parent=0 // pred_check
    _
  $region47: #{bert_classifier_forward.1} parent=0 // pred_check_branch
    %48 = sbr.rel (0) target = $region49
  $region48: #{bert_classifier_forward.1} parent=0 // pred_region
    _
  $region49: #{bert_classifier_forward.1} parent=0 // pred_fallthru
    _
  // Predicated region
  $region50: #{bert_classifier_forward.1} parent=0 // pred_check
    _
  $region51: #{bert_classifier_forward.1} parent=0 // pred_check_branch
    %50 = sbr.rel (0) target = $region53
  $region52: #{bert_classifier_forward.1} parent=0 // pred_region
    _
  $region53: #{bert_classifier_forward.1} parent=0 // pred_fallthru
    _
  // Predicated region
  $region54: #{bert_classifier_forward.1} parent=0 // pred_check
    _
  $region55: #{bert_classifier_forward.1} parent=0 // pred_check_branch
    %52 = sbr.rel (0) target = $region57
  $region56: #{bert_classifier_forward.1} parent=0 // pred_region
    _
  $region57: #{bert_classifier_forward.1} parent=0 // pred_fallthru
    _
  // Predicated region
  $region58: #{bert_classifier_forward.1} parent=0 // pred_check
    _
  $region59: #{bert_classifier_forward.1} parent=0 // pred_check_branch
    %54 = sbr.rel (0) target = $region61
  $region60: #{bert_classifier_forward.1} parent=0 // pred_region
    _
  $region61: #{bert_classifier_forward.1} parent=0 // pred_fallthru
    _
  // Predicated region
  $region62: #{bert_classifier_forward.1} parent=0 // pred_check
    _
  $region63: #{bert_classifier_forward.1} parent=0 // pred_check_branch
    %56 = sbr.rel (0) target = $region65
  $region64: #{bert_classifier_forward.1} parent=0 // pred_region
    _
  $region65: #{bert_classifier_forward.1} parent=0 // pred_fallthru
    _
  // Predicated region
  $region66: #{bert_classifier_forward.1} parent=0 // pred_check
    _
  $region67: #{bert_classifier_forward.1} parent=0 // pred_check_branch
    %58 = sbr.rel (0) target = $region69
  $region68: #{bert_classifier_forward.1} parent=0 // pred_region
    _
  $region69: #{bert_classifier_forward.1} parent=0 // pred_fallthru
    _
  // Predicated region
  $region70: #{bert_classifier_forward.1} parent=0 // pred_check
    _
  $region71: #{bert_classifier_forward.1} parent=0 // pred_check_branch
    %60 = sbr.rel (0) target = $region73
  $region72: #{bert_classifier_forward.1} parent=0 // pred_region
    _
  $region73: #{bert_classifier_forward.1} parent=0 // pred_fallthru
    _
  // Predicated region
  $region74: #{bert_classifier_forward.1} parent=0 // pred_check
    _
  $region75: #{bert_classifier_forward.1} parent=0 // pred_check_branch
    %62 = sbr.rel (0) target = $region77
  $region76: #{bert_classifier_forward.1} parent=0 // pred_region
    _
  $region77: #{bert_classifier_forward.1} parent=0 // pred_fallthru
    _
  // Predicated region
  $region78: #{bert_classifier_forward.1} parent=0 // pred_check
    _
  $region79: #{bert_classifier_forward.1} parent=0 // pred_check_branch
    %64 = sbr.rel (0) target = $region81
  $region80: #{bert_classifier_forward.1} parent=0 // pred_region
    _
  $region81: #{bert_classifier_forward.1} parent=0 // pred_fallthru
    _
  %v65 = vld [vmem:[%s0] sm:$0xff]
  %v66 = vld [vmem:[%s0 + $0x8] sm:$0xff]
  %v67 = vld [vmem:[%s2] sm:$0x1]
  %v68 = vld [vmem:[%s3] sm:$0x1]
  %vm69 = vcmask 261120
  %v70 = vsel %vm69, %v65, 0.0
  %71 = vadd.xlane.f32.xlu0 %v70
  %v72 = vpop.xlane.xlu0 %71
  %v73 = vsel %vm69, %v66, 0.0
  %74 = vadd.xlane.f32.xlu0 %v73
  %v75 = vpop.xlane.xlu0 %74
  %v76 = vrcp.pop 32.0
  %v77 = vmul.f32 32.0, %v76
  %v78 = vsub.f32 1.0, %v77
  %v79 = vmul.f32 %v76, %v78
  %v80 = vadd.f32 %v76, %v79
  %vm81 = vweird.f32 %v76
  %v82 = vsel %vm81, %v76, %v80
  %v83 = vmul.f32 %v72, %v82
  %v84 = vmul.f32 %v75, %v82
  %v85 = vsub.f32 %v65, %v83
  %v86 = vsub.f32 %v66, %v84
  %v87 = vmul.f32 %v85, %v85
  %v88 = vmul.f32 %v86, %v86
  %v89 = vsel %vm69, %v87, 0.0
  %90 = vadd.xlane.f32.xlu0 %v89
  %v91 = vpop.xlane.xlu0 %90
  %v92 = vsel %vm69, %v88, 0.0
  %93 = vadd.xlane.f32.xlu0 %v92
  %v94 = vpop.xlane.xlu0 %93
  %v95 = vmul.f32 %v91, %v82
  %v96 = vmul.f32 %v94, %v82
  %v97 = vadd.f32 %v95, 1e-12
  %v98 = vadd.f32 %v96, 1e-12
  %v99 = vrsqrt.pop %v97
  %v100 = vmul.f32 %v99, %v97
  %v101 = vmul.f32 %v100, %v99
  %v102 = vmul.f32 0.5, %v101
  %v103 = vsub.f32 1.5, %v102
  %v104 = vmul.f32 %v99, %v103
  %vm105 = vweird.f32 %v97
  %vm106 = vweird.f32 %v99
  %vm107 = vmor %vm105, %vm106
  %v108 = vsel %vm107, %v99, %v104
  %v109 = vrsqrt.pop %v98
  %v110 = vmul.f32 %v109, %v98
  %v111 = vmul.f32 %v110, %v109
  %v112 = vmul.f32 0.5, %v111
  %v113 = vsub.f32 1.5, %v112
  %v114 = vmul.f32 %v109, %v113
  %vm115 = vweird.f32 %v98
  %vm116 = vweird.f32 %v109
  %vm117 = vmor %vm115, %vm116
  %v118 = vsel %vm117, %v109, %v114
  %v119 = vmul.f32 %v85, %v108
  %v120 = vmul.f32 %v86, %v118
  %v122 = vperm.slane %v67, 0
  %v124 = vmul.f32 %v119, %v122
  %v125 = vmul.f32 %v120, %v122
  %v127 = vperm.slane %v68, 0
  %v129 = vadd.f32 %v124, %v127
  %v130 = vadd.f32 %v125, %v127
  %v131 = vld [vmem:[%s1] sm:$0x1]
  %v132 = vld [vmem:[%s1 + $0x1] sm:$0x1]
  %v133 = vld [vmem:[%s4] sm:$0xff]
  %v134 = vld [vmem:[%s4 + $0x8] sm:$0xff]
  %v135 = vld [vmem:[%s4 + $0x10] sm:$0xff]
  %v136 = vld [vmem:[%s4 + $0x18] sm:$0xff]
  %v137 = vld [vmem:[%s5] sm:$0x1]
  %v139 = vperm.slane %v137, 0
  %v142 = vsel %vm69, %v129, 0
  %v145 = vsel %vm69, %v130, 0
  %147 = vmatpush.msra.mxu0 0.0
  %148 = vmatpush.msra.mxu0 0.0
  %149 = vmatpush.msra.mxu0 0.0
  %150 = vmatpush.msra.mxu0 0.0
  %151 = vmatpush.msra.mxu0 0.0
  %152 = vmatpush.msra.mxu0 0.0
  %153 = vmatpush.msra.mxu0 0.0
  %154 = vmatpush.msra.mxu0 0.0
  %155 = vmatpush.msra.mxu0 0.0
  %156 = vmatpush.msra.mxu0 0.0
  %157 = vmatpush.msra.mxu0 0.0
  %158 = vmatpush.msra.mxu0 0.0
  %159 = vmatpush.msra.mxu0 %v136
  %160 = vmatpush.msra.mxu0 %v135
  %161 = vmatpush.msra.mxu0 %v134
  %162 = vmatpush.msra.mxu0 %v133
  %163 = vmatmul.f32.gmra.mxu0 %v142
  %v164 = vpop.f32.mrf.mxu0
  %v165 = vadd.f32 %v139, %v164
  %166 = vmatmul.f32.gmra.mxu0 %v145
  %v167 = vpop.f32.mrf.mxu0
  %v168 = vadd.f32 %v139, %v167
  %169 = vdwg.mxu0
  %v170 = vld [vmem:[%s6] sm:$0xff]
  %v171 = vld [vmem:[%s6 + $0x8] sm:$0xff]
  %v172 = vld [vmem:[%s6 + $0x10] sm:$0xff]
  %v173 = vld [vmem:[%s6 + $0x18] sm:$0xff]
  %v174 = vld [vmem:[%s7] sm:$0x1]
  %v177 = vperm.slane %v131, 0
  %v178 = vperm.slane %v132, 0
  %182 = vrot.lane.b32.xlu0 %v165, 96
  %v183 = vpop.permute.xlu0 %182
  %vm184 = vcmask 64512
  %v185 = vsel %vm184, %v165, 0
  %v187 = vsel %vm184, %v183, 0
  %189 = vmatpush.xpose.msra.mxu0 0.0
  %190 = vmatpush.xpose.msra.mxu0 0.0
  %191 = vmatpush.xpose.msra.mxu0 0.0
  %192 = vmatpush.xpose.msra.mxu0 0.0
  %193 = vmatpush.xpose.msra.mxu0 0.0
  %194 = vmatpush.xpose.msra.mxu0 0.0
  %195 = vmatpush.xpose.msra.mxu0 0.0
  %196 = vmatpush.xpose.msra.mxu0 0.0
  %197 = vmatpush.xpose.msra.mxu0 0.0
  %198 = vmatpush.xpose.msra.mxu0 0.0
  %199 = vmatpush.xpose.msra.mxu0 0.0
  %200 = vmatpush.xpose.msra.mxu0 0.0
  %201 = vmatpush.xpose.msra.mxu0 0.0
  %202 = vmatpush.xpose.msra.mxu0 0.0
  %203 = vmatpush.xpose.msra.mxu0 0.0
  %204 = vmatpush.xpose.msra.mxu0 %v187
  %205 = vmatmul.f32.gmra.mxu0 %v185
  %v206 = vpop.f32.mrf.mxu0
  %v207 = vadd.f32 %v177, %v206
  %208 = vdwg.mxu0
  %210 = vrot.lane.b32.xlu0 %v168, 96
  %v211 = vpop.permute.xlu0 %210
  %v212 = vsel %vm184, %v168, 0
  %v214 = vsel %vm184, %v211, 0
  %216 = vmatpush.xpose.msra.mxu0 0.0
  %217 = vmatpush.xpose.msra.mxu0 0.0
  %218 = vmatpush.xpose.msra.mxu0 0.0
  %219 = vmatpush.xpose.msra.mxu0 0.0
  %220 = vmatpush.xpose.msra.mxu0 0.0
  %221 = vmatpush.xpose.msra.mxu0 0.0
  %222 = vmatpush.xpose.msra.mxu0 0.0
  %223 = vmatpush.xpose.msra.mxu0 0.0
  %224 = vmatpush.xpose.msra.mxu0 0.0
  %225 = vmatpush.xpose.msra.mxu0 0.0
  %226 = vmatpush.xpose.msra.mxu0 0.0
  %227 = vmatpush.xpose.msra.mxu0 0.0
  %228 = vmatpush.xpose.msra.mxu0 0.0
  %229 = vmatpush.xpose.msra.mxu0 0.0
  %230 = vmatpush.xpose.msra.mxu0 0.0
  %231 = vmatpush.xpose.msra.mxu0 %v214
  %232 = vmatmul.f32.gmra.mxu0 %v212
  %v233 = vpop.f32.mrf.mxu0
  %v234 = vadd.f32 %v178, %v233
  %235 = vdwg.mxu0
  %v236 = vsel %vm184, %v207, -inf
  %237 = vmax.xlane.f32.xlu0 %v236
  %v238 = vpop.xlane.xlu0 %237
  %v239 = vsel %vm184, %v234, -inf
  %240 = vmax.xlane.f32.xlu0 %v239
  %v241 = vpop.xlane.xlu0 %240
  %v242 = vsub.f32 %v207, %v238
  %v243 = vsub.f32 %v234, %v241
  %v244 = vmul.f32 %v242, 1.442695
  %v245 = vpow.pop %v244
  %v246 = vmul.f32 %v243, 1.442695
  %v247 = vpow.pop %v246
  %v248 = vsel %vm184, %v245, 0.0
  %249 = vadd.xlane.f32.xlu0 %v248
  %v250 = vpop.xlane.xlu0 %249
  %v251 = vsel %vm184, %v247, 0.0
  %252 = vadd.xlane.f32.xlu0 %v251
  %v253 = vpop.xlane.xlu0 %252
  %v254 = vrcp.pop %v250
  %v255 = vrcp.pop %v253
  %v256 = vmul.f32 %v245, %v254
  %v257 = vmul.f32 %v247, %v255
  %258 = vrot.lane.b32.xlu0 %v165, 64
  %v259 = vpop.permute.xlu0 %258
  %v262 = vsel %vm184, %v256, 0
  %264 = vmatpush.msra.mxu0 0.0
  %265 = vmatpush.msra.mxu0 0.0
  %266 = vmatpush.msra.mxu0 0.0
  %267 = vmatpush.msra.mxu0 0.0
  %268 = vmatpush.msra.mxu0 0.0
  %269 = vmatpush.msra.mxu0 0.0
  %270 = vmatpush.msra.mxu0 0.0
  %271 = vmatpush.msra.mxu0 0.0
  %272 = vmatpush.msra.mxu0 0.0
  %273 = vmatpush.msra.mxu0 0.0
  %274 = vmatpush.msra.mxu0 0.0
  %275 = vmatpush.msra.mxu0 0.0
  %276 = vmatpush.msra.mxu0 0.0
  %277 = vmatpush.msra.mxu0 0.0
  %278 = vmatpush.msra.mxu0 0.0
  %279 = vmatpush.msra.mxu0 %v259
  %280 = vmatmul.f32.gmra.mxu0 %v262
  %v281 = vpop.f32.mrf.mxu0
  %v282 = vadd.f32 0.0, %v281
  %283 = vdwg.mxu0
  %284 = vrot.lane.b32.xlu0 %v168, 64
  %v285 = vpop.permute.xlu0 %284
  %v288 = vsel %vm184, %v257, 0
  %290 = vmatpush.msra.mxu0 0.0
  %291 = vmatpush.msra.mxu0 0.0
  %292 = vmatpush.msra.mxu0 0.0
  %293 = vmatpush.msra.mxu0 0.0
  %294 = vmatpush.msra.mxu0 0.0
  %295 = vmatpush.msra.mxu0 0.0
  %296 = vmatpush.msra.mxu0 0.0
  %297 = vmatpush.msra.mxu0 0.0
  %298 = vmatpush.msra.mxu0 0.0
  %299 = vmatpush.msra.mxu0 0.0
  %300 = vmatpush.msra.mxu0 0.0
  %301 = vmatpush.msra.mxu0 0.0
  %302 = vmatpush.msra.mxu0 0.0
  %303 = vmatpush.msra.mxu0 0.0
  %304 = vmatpush.msra.mxu0 0.0
  %305 = vmatpush.msra.mxu0 %v285
  %306 = vmatmul.f32.gmra.mxu0 %v288
  %v307 = vpop.f32.mrf.mxu0
  %v308 = vadd.f32 0.0, %v307
  %309 = vdwg.mxu0
  %v311 = vsel %vm184, %v282, 0
  %v314 = vsel %vm184, %v308, 0
  %316 = vmatpush.msra.mxu0 0.0
  %317 = vmatpush.msra.mxu0 0.0
  %318 = vmatpush.msra.mxu0 0.0
  %319 = vmatpush.msra.mxu0 0.0
  %320 = vmatpush.msra.mxu0 0.0
  %321 = vmatpush.msra.mxu0 0.0
  %322 = vmatpush.msra.mxu0 0.0
  %323 = vmatpush.msra.mxu0 0.0
  %324 = vmatpush.msra.mxu0 0.0
  %325 = vmatpush.msra.mxu0 0.0
  %326 = vmatpush.msra.mxu0 0.0
  %327 = vmatpush.msra.mxu0 0.0
  %328 = vmatpush.msra.mxu0 0.0
  %329 = vmatpush.msra.mxu0 0.0
  %330 = vmatpush.msra.mxu0 0.0
  %331 = vmatpush.msra.mxu0 %v170
  %332 = vmatmul.f32.gmra.mxu0 %v311
  %v333 = vpop.f32.mrf.mxu0
  %v334 = vadd.f32 0.0, %v333
  %335 = vmatmul.f32.gmra.mxu0 %v314
  %v336 = vpop.f32.mrf.mxu0
  %v337 = vadd.f32 0.0, %v336
  %338 = vdwg.mxu0
  %v340 = vperm.slane %v174, 0
  %v342 = vadd.f32 %v340, %v334
  %v343 = vadd.f32 %v340, %v337
  %344 = vrot.lane.b32.xlu0 %v165, 120
  %v345 = vpop.permute.xlu0 %344
  %346 = vrot.lane.b32.xlu0 %v165, 88
  %v347 = vpop.permute.xlu0 %346
  %v348 = vsel %vm184, %v345, 0
  %v350 = vsel %vm184, %v347, 0
  %352 = vmatpush.xpose.msra.mxu0 0.0
  %353 = vmatpush.xpose.msra.mxu0 0.0
  %354 = vmatpush.xpose.msra.mxu0 0.0
  %355 = vmatpush.xpose.msra.mxu0 0.0
  %356 = vmatpush.xpose.msra.mxu0 0.0
  %357 = vmatpush.xpose.msra.mxu0 0.0
  %358 = vmatpush.xpose.msra.mxu0 0.0
  %359 = vmatpush.xpose.msra.mxu0 0.0
  %360 = vmatpush.xpose.msra.mxu0 0.0
  %361 = vmatpush.xpose.msra.mxu0 0.0
  %362 = vmatpush.xpose.msra.mxu0 0.0
  %363 = vmatpush.xpose.msra.mxu0 0.0
  %364 = vmatpush.xpose.msra.mxu0 0.0
  %365 = vmatpush.xpose.msra.mxu0 0.0
  %366 = vmatpush.xpose.msra.mxu0 0.0
  %367 = vmatpush.xpose.msra.mxu0 %v350
  %368 = vmatmul.f32.gmra.mxu0 %v348
  %v369 = vpop.f32.mrf.mxu0
  %v370 = vadd.f32 %v177, %v369
  %371 = vdwg.mxu0
  %372 = vrot.lane.b32.xlu0 %v168, 120
  %v373 = vpop.permute.xlu0 %372
  %374 = vrot.lane.b32.xlu0 %v168, 88
  %v375 = vpop.permute.xlu0 %374
  %v376 = vsel %vm184, %v373, 0
  %v378 = vsel %vm184, %v375, 0
  %380 = vmatpush.xpose.msra.mxu0 0.0
  %381 = vmatpush.xpose.msra.mxu0 0.0
  %382 = vmatpush.xpose.msra.mxu0 0.0
  %383 = vmatpush.xpose.msra.mxu0 0.0
  %384 = vmatpush.xpose.msra.mxu0 0.0
  %385 = vmatpush.xpose.msra.mxu0 0.0
  %386 = vmatpush.xpose.msra.mxu0 0.0
  %387 = vmatpush.xpose.msra.mxu0 0.0
  %388 = vmatpush.xpose.msra.mxu0 0.0
  %389 = vmatpush.xpose.msra.mxu0 0.0
  %390 = vmatpush.xpose.msra.mxu0 0.0
  %391 = vmatpush.xpose.msra.mxu0 0.0
  %392 = vmatpush.xpose.msra.mxu0 0.0
  %393 = vmatpush.xpose.msra.mxu0 0.0
  %394 = vmatpush.xpose.msra.mxu0 0.0
  %395 = vmatpush.xpose.msra.mxu0 %v378
  %396 = vmatmul.f32.gmra.mxu0 %v376
  %v397 = vpop.f32.mrf.mxu0
  %v398 = vadd.f32 %v178, %v397
  %399 = vdwg.mxu0
  %v400 = vsel %vm184, %v370, -inf
  %401 = vmax.xlane.f32.xlu0 %v400
  %v402 = vpop.xlane.xlu0 %401
  %v403 = vsel %vm184, %v398, -inf
  %404 = vmax.xlane.f32.xlu0 %v403
  %v405 = vpop.xlane.xlu0 %404
  %v406 = vsub.f32 %v370, %v402
  %v407 = vsub.f32 %v398, %v405
  %v408 = vmul.f32 %v406, 1.442695
  %v409 = vpow.pop %v408
  %v410 = vmul.f32 %v407, 1.442695
  %v411 = vpow.pop %v410
  %v412 = vsel %vm184, %v409, 0.0
  %413 = vadd.xlane.f32.xlu0 %v412
  %v414 = vpop.xlane.xlu0 %413
  %v415 = vsel %vm184, %v411, 0.0
  %416 = vadd.xlane.f32.xlu0 %v415
  %v417 = vpop.xlane.xlu0 %416
  %v418 = vrcp.pop %v414
  %v419 = vrcp.pop %v417
  %v420 = vmul.f32 %v409, %v418
  %v421 = vmul.f32 %v411, %v419
  %422 = vrot.lane.b32.xlu0 %v165, 56
  %v423 = vpop.permute.xlu0 %422
  %v426 = vsel %vm184, %v420, 0
  %428 = vmatpush.msra.mxu0 0.0
  %429 = vmatpush.msra.mxu0 0.0
  %430 = vmatpush.msra.mxu0 0.0
  %431 = vmatpush.msra.mxu0 0.0
  %432 = vmatpush.msra.mxu0 0.0
  %433 = vmatpush.msra.mxu0 0.0
  %434 = vmatpush.msra.mxu0 0.0
  %435 = vmatpush.msra.mxu0 0.0
  %436 = vmatpush.msra.mxu0 0.0
  %437 = vmatpush.msra.mxu0 0.0
  %438 = vmatpush.msra.mxu0 0.0
  %439 = vmatpush.msra.mxu0 0.0
  %440 = vmatpush.msra.mxu0 0.0
  %441 = vmatpush.msra.mxu0 0.0
  %442 = vmatpush.msra.mxu0 0.0
  %443 = vmatpush.msra.mxu0 %v423
  %444 = vmatmul.f32.gmra.mxu0 %v426
  %v445 = vpop.f32.mrf.mxu0
  %v446 = vadd.f32 0.0, %v445
  %447 = vdwg.mxu0
  %448 = vrot.lane.b32.xlu0 %v168, 56
  %v449 = vpop.permute.xlu0 %448
  %v452 = vsel %vm184, %v421, 0
  %454 = vmatpush.msra.mxu0 0.0
  %455 = vmatpush.msra.mxu0 0.0
  %456 = vmatpush.msra.mxu0 0.0
  %457 = vmatpush.msra.mxu0 0.0
  %458 = vmatpush.msra.mxu0 0.0
  %459 = vmatpush.msra.mxu0 0.0
  %460 = vmatpush.msra.mxu0 0.0
  %461 = vmatpush.msra.mxu0 0.0
  %462 = vmatpush.msra.mxu0 0.0
  %463 = vmatpush.msra.mxu0 0.0
  %464 = vmatpush.msra.mxu0 0.0
  %465 = vmatpush.msra.mxu0 0.0
  %466 = vmatpush.msra.mxu0 0.0
  %467 = vmatpush.msra.mxu0 0.0
  %468 = vmatpush.msra.mxu0 0.0
  %469 = vmatpush.msra.mxu0 %v449
  %470 = vmatmul.f32.gmra.mxu0 %v452
  %v471 = vpop.f32.mrf.mxu0
  %v472 = vadd.f32 0.0, %v471
  %473 = vdwg.mxu0
  %v475 = vsel %vm184, %v446, 0
  %v478 = vsel %vm184, %v472, 0
  %480 = vmatpush.msra.mxu0 0.0
  %481 = vmatpush.msra.mxu0 0.0
  %482 = vmatpush.msra.mxu0 0.0
  %483 = vmatpush.msra.mxu0 0.0
  %484 = vmatpush.msra.mxu0 0.0
  %485 = vmatpush.msra.mxu0 0.0
  %486 = vmatpush.msra.mxu0 0.0
  %487 = vmatpush.msra.mxu0 0.0
  %488 = vmatpush.msra.mxu0 0.0
  %489 = vmatpush.msra.mxu0 0.0
  %490 = vmatpush.msra.mxu0 0.0
  %491 = vmatpush.msra.mxu0 0.0
  %492 = vmatpush.msra.mxu0 0.0
  %493 = vmatpush.msra.mxu0 0.0
  %494 = vmatpush.msra.mxu0 0.0
  %495 = vmatpush.msra.mxu0 %v171
  %496 = vmatmul.f32.gmra.mxu0 %v475
  %v497 = vpop.f32.mrf.mxu0
  %v498 = vadd.f32 0.0, %v497
  %499 = vmatmul.f32.gmra.mxu0 %v478
  %v500 = vpop.f32.mrf.mxu0
  %v501 = vadd.f32 0.0, %v500
  %502 = vdwg.mxu0
  %v503 = vadd.f32 %v342, %v498
  %v504 = vadd.f32 %v343, %v501
  %505 = vrot.lane.b32.xlu0 %v165, 112
  %v506 = vpop.permute.xlu0 %505
  %507 = vrot.lane.b32.xlu0 %v165, 80
  %v508 = vpop.permute.xlu0 %507
  %v509 = vsel %vm184, %v506, 0
  %v511 = vsel %vm184, %v508, 0
  %513 = vmatpush.xpose.msra.mxu0 0.0
  %514 = vmatpush.xpose.msra.mxu0 0.0
  %515 = vmatpush.xpose.msra.mxu0 0.0
  %516 = vmatpush.xpose.msra.mxu0 0.0
  %517 = vmatpush.xpose.msra.mxu0 0.0
  %518 = vmatpush.xpose.msra.mxu0 0.0
  %519 = vmatpush.xpose.msra.mxu0 0.0
  %520 = vmatpush.xpose.msra.mxu0 0.0
  %521 = vmatpush.xpose.msra.mxu0 0.0
  %522 = vmatpush.xpose.msra.mxu0 0.0
  %523 = vmatpush.xpose.msra.mxu0 0.0
  %524 = vmatpush.xpose.msra.mxu0 0.0
  %525 = vmatpush.xpose.msra.mxu0 0.0
  %526 = vmatpush.xpose.msra.mxu0 0.0
  %527 = vmatpush.xpose.msra.mxu0 0.0
  %528 = vmatpush.xpose.msra.mxu0 %v511
  %529 = vmatmul.f32.gmra.mxu0 %v509
  %v530 = vpop.f32.mrf.mxu0
  %v531 = vadd.f32 %v177, %v530
  %532 = vdwg.mxu0
  %533 = vrot.lane.b32.xlu0 %v168, 112
  %v534 = vpop.permute.xlu0 %533
  %535 = vrot.lane.b32.xlu0 %v168, 80
  %v536 = vpop.permute.xlu0 %535
  %v537 = vsel %vm184, %v534, 0
  %v539 = vsel %vm184, %v536, 0
  %541 = vmatpush.xpose.msra.mxu0 0.0
  %542 = vmatpush.xpose.msra.mxu0 0.0
  %543 = vmatpush.xpose.msra.mxu0 0.0
  %544 = vmatpush.xpose.msra.mxu0 0.0
  %545 = vmatpush.xpose.msra.mxu0 0.0
  %546 = vmatpush.xpose.msra.mxu0 0.0
  %547 = vmatpush.xpose.msra.mxu0 0.0
  %548 = vmatpush.xpose.msra.mxu0 0.0
  %549 = vmatpush.xpose.msra.mxu0 0.0
  %550 = vmatpush.xpose.msra.mxu0 0.0
  %551 = vmatpush.xpose.msra.mxu0 0.0
  %552 = vmatpush.xpose.msra.mxu0 0.0
  %553 = vmatpush.xpose.msra.mxu0 0.0
  %554 = vmatpush.xpose.msra.mxu0 0.0
  %555 = vmatpush.xpose.msra.mxu0 0.0
  %556 = vmatpush.xpose.msra.mxu0 %v539
  %557 = vmatmul.f32.gmra.mxu0 %v537
  %v558 = vpop.f32.mrf.mxu0
  %v559 = vadd.f32 %v178, %v558
  %560 = vdwg.mxu0
  %v561 = vsel %vm184, %v531, -inf
  %562 = vmax.xlane.f32.xlu0 %v561
  %v563 = vpop.xlane.xlu0 %562
  %v564 = vsel %vm184, %v559, -inf
  %565 = vmax.xlane.f32.xlu0 %v564
  %v566 = vpop.xlane.xlu0 %565
  %v567 = vsub.f32 %v531, %v563
  %v568 = vsub.f32 %v559, %v566
  %v569 = vmul.f32 %v567, 1.442695
  %v570 = vpow.pop %v569
  %v571 = vmul.f32 %v568, 1.442695
  %v572 = vpow.pop %v571
  %v573 = vsel %vm184, %v570, 0.0
  %574 = vadd.xlane.f32.xlu0 %v573
  %v575 = vpop.xlane.xlu0 %574
  %v576 = vsel %vm184, %v572, 0.0
  %577 = vadd.xlane.f32.xlu0 %v576
  %v578 = vpop.xlane.xlu0 %577
  %v579 = vrcp.pop %v575
  %v580 = vrcp.pop %v578
  %v581 = vmul.f32 %v570, %v579
  %v582 = vmul.f32 %v572, %v580
  %583 = vrot.lane.b32.xlu0 %v165, 48
  %v584 = vpop.permute.xlu0 %583
  %v587 = vsel %vm184, %v581, 0
  %589 = vmatpush.msra.mxu0 0.0
  %590 = vmatpush.msra.mxu0 0.0
  %591 = vmatpush.msra.mxu0 0.0
  %592 = vmatpush.msra.mxu0 0.0
  %593 = vmatpush.msra.mxu0 0.0
  %594 = vmatpush.msra.mxu0 0.0
  %595 = vmatpush.msra.mxu0 0.0
  %596 = vmatpush.msra.mxu0 0.0
  %597 = vmatpush.msra.mxu0 0.0
  %598 = vmatpush.msra.mxu0 0.0
  %599 = vmatpush.msra.mxu0 0.0
  %600 = vmatpush.msra.mxu0 0.0
  %601 = vmatpush.msra.mxu0 0.0
  %602 = vmatpush.msra.mxu0 0.0
  %603 = vmatpush.msra.mxu0 0.0
  %604 = vmatpush.msra.mxu0 %v584
  %605 = vmatmul.f32.gmra.mxu0 %v587
  %v606 = vpop.f32.mrf.mxu0
  %v607 = vadd.f32 0.0, %v606
  %608 = vdwg.mxu0
  %609 = vrot.lane.b32.xlu0 %v168, 48
  %v610 = vpop.permute.xlu0 %609
  %v613 = vsel %vm184, %v582, 0
  %615 = vmatpush.msra.mxu0 0.0
  %616 = vmatpush.msra.mxu0 0.0
  %617 = vmatpush.msra.mxu0 0.0
  %618 = vmatpush.msra.mxu0 0.0
  %619 = vmatpush.msra.mxu0 0.0
  %620 = vmatpush.msra.mxu0 0.0
  %621 = vmatpush.msra.mxu0 0.0
  %622 = vmatpush.msra.mxu0 0.0
  %623 = vmatpush.msra.mxu0 0.0
  %624 = vmatpush.msra.mxu0 0.0
  %625 = vmatpush.msra.mxu0 0.0
  %626 = vmatpush.msra.mxu0 0.0
  %627 = vmatpush.msra.mxu0 0.0
  %628 = vmatpush.msra.mxu0 0.0
  %629 = vmatpush.msra.mxu0 0.0
  %630 = vmatpush.msra.mxu0 %v610
  %631 = vmatmul.f32.gmra.mxu0 %v613
  %v632 = vpop.f32.mrf.mxu0
  %v633 = vadd.f32 0.0, %v632
  %634 = vdwg.mxu0
  %v636 = vsel %vm184, %v607, 0
  %v639 = vsel %vm184, %v633, 0
  %641 = vmatpush.msra.mxu0 0.0
  %642 = vmatpush.msra.mxu0 0.0
  %643 = vmatpush.msra.mxu0 0.0
  %644 = vmatpush.msra.mxu0 0.0
  %645 = vmatpush.msra.mxu0 0.0
  %646 = vmatpush.msra.mxu0 0.0
  %647 = vmatpush.msra.mxu0 0.0
  %648 = vmatpush.msra.mxu0 0.0
  %649 = vmatpush.msra.mxu0 0.0
  %650 = vmatpush.msra.mxu0 0.0
  %651 = vmatpush.msra.mxu0 0.0
  %652 = vmatpush.msra.mxu0 0.0
  %653 = vmatpush.msra.mxu0 0.0
  %654 = vmatpush.msra.mxu0 0.0
  %655 = vmatpush.msra.mxu0 0.0
  %656 = vmatpush.msra.mxu0 %v172
  %657 = vmatmul.f32.gmra.mxu0 %v636
  %v658 = vpop.f32.mrf.mxu0
  %v659 = vadd.f32 0.0, %v658
  %660 = vmatmul.f32.gmra.mxu0 %v639
  %v661 = vpop.f32.mrf.mxu0
  %v662 = vadd.f32 0.0, %v661
  %663 = vdwg.mxu0
  %v664 = vadd.f32 %v503, %v659
  %v665 = vadd.f32 %v504, %v662
  %666 = vrot.lane.b32.xlu0 %v165, 104
  %v667 = vpop.permute.xlu0 %666
  %668 = vrot.lane.b32.xlu0 %v165, 72
  %v669 = vpop.permute.xlu0 %668
  %v670 = vsel %vm184, %v667, 0
  %v672 = vsel %vm184, %v669, 0
  %674 = vmatpush.xpose.msra.mxu0 0.0
  %675 = vmatpush.xpose.msra.mxu0 0.0
  %676 = vmatpush.xpose.msra.mxu0 0.0
  %677 = vmatpush.xpose.msra.mxu0 0.0
  %678 = vmatpush.xpose.msra.mxu0 0.0
  %679 = vmatpush.xpose.msra.mxu0 0.0
  %680 = vmatpush.xpose.msra.mxu0 0.0
  %681 = vmatpush.xpose.msra.mxu0 0.0
  %682 = vmatpush.xpose.msra.mxu0 0.0
  %683 = vmatpush.xpose.msra.mxu0 0.0
  %684 = vmatpush.xpose.msra.mxu0 0.0
  %685 = vmatpush.xpose.msra.mxu0 0.0
  %686 = vmatpush.xpose.msra.mxu0 0.0
  %687 = vmatpush.xpose.msra.mxu0 0.0
  %688 = vmatpush.xpose.msra.mxu0 0.0
  %689 = vmatpush.xpose.msra.mxu0 %v672
  %690 = vmatmul.f32.gmra.mxu0 %v670
  %v691 = vpop.f32.mrf.mxu0
  %v692 = vadd.f32 %v177, %v691
  %693 = vdwg.mxu0
  %694 = vrot.lane.b32.xlu0 %v168, 104
  %v695 = vpop.permute.xlu0 %694
  %696 = vrot.lane.b32.xlu0 %v168, 72
  %v697 = vpop.permute.xlu0 %696
  %v698 = vsel %vm184, %v695, 0
  %v700 = vsel %vm184, %v697, 0
  %702 = vmatpush.xpose.msra.mxu0 0.0
  %703 = vmatpush.xpose.msra.mxu0 0.0
  %704 = vmatpush.xpose.msra.mxu0 0.0
  %705 = vmatpush.xpose.msra.mxu0 0.0
  %706 = vmatpush.xpose.msra.mxu0 0.0
  %707 = vmatpush.xpose.msra.mxu0 0.0
  %708 = vmatpush.xpose.msra.mxu0 0.0
  %709 = vmatpush.xpose.msra.mxu0 0.0
  %710 = vmatpush.xpose.msra.mxu0 0.0
  %711 = vmatpush.xpose.msra.mxu0 0.0
  %712 = vmatpush.xpose.msra.mxu0 0.0
  %713 = vmatpush.xpose.msra.mxu0 0.0
  %714 = vmatpush.xpose.msra.mxu0 0.0
  %715 = vmatpush.xpose.msra.mxu0 0.0
  %716 = vmatpush.xpose.msra.mxu0 0.0
  %717 = vmatpush.xpose.msra.mxu0 %v700
  %718 = vmatmul.f32.gmra.mxu0 %v698
  %v719 = vpop.f32.mrf.mxu0
  %v720 = vadd.f32 %v178, %v719
  %721 = vdwg.mxu0
  %v722 = vsel %vm184, %v692, -inf
  %723 = vmax.xlane.f32.xlu0 %v722
  %v724 = vpop.xlane.xlu0 %723
  %v725 = vsel %vm184, %v720, -inf
  %726 = vmax.xlane.f32.xlu0 %v725
  %v727 = vpop.xlane.xlu0 %726
  %v728 = vsub.f32 %v692, %v724
  %v729 = vsub.f32 %v720, %v727
  %v730 = vmul.f32 %v728, 1.442695
  %v731 = vpow.pop %v730
  %v732 = vmul.f32 %v729, 1.442695
  %v733 = vpow.pop %v732
  %v734 = vsel %vm184, %v731, 0.0
  %735 = vadd.xlane.f32.xlu0 %v734
  %v736 = vpop.xlane.xlu0 %735
  %v737 = vsel %vm184, %v733, 0.0
  %738 = vadd.xlane.f32.xlu0 %v737
  %v739 = vpop.xlane.xlu0 %738
  %v740 = vrcp.pop %v736
  %v741 = vrcp.pop %v739
  %v742 = vmul.f32 %v731, %v740
  %v743 = vmul.f32 %v733, %v741
  %744 = vrot.lane.b32.xlu0 %v165, 40
  %v745 = vpop.permute.xlu0 %744
  %v748 = vsel %vm184, %v742, 0
  %750 = vmatpush.msra.mxu0 0.0
  %751 = vmatpush.msra.mxu0 0.0
  %752 = vmatpush.msra.mxu0 0.0
  %753 = vmatpush.msra.mxu0 0.0
  %754 = vmatpush.msra.mxu0 0.0
  %755 = vmatpush.msra.mxu0 0.0
  %756 = vmatpush.msra.mxu0 0.0
  %757 = vmatpush.msra.mxu0 0.0
  %758 = vmatpush.msra.mxu0 0.0
  %759 = vmatpush.msra.mxu0 0.0
  %760 = vmatpush.msra.mxu0 0.0
  %761 = vmatpush.msra.mxu0 0.0
  %762 = vmatpush.msra.mxu0 0.0
  %763 = vmatpush.msra.mxu0 0.0
  %764 = vmatpush.msra.mxu0 0.0
  %765 = vmatpush.msra.mxu0 %v745
  %766 = vmatmul.f32.gmra.mxu0 %v748
  %v767 = vpop.f32.mrf.mxu0
  %v768 = vadd.f32 0.0, %v767
  %769 = vdwg.mxu0
  %770 = vrot.lane.b32.xlu0 %v168, 40
  %v771 = vpop.permute.xlu0 %770
  %v774 = vsel %vm184, %v743, 0
  %776 = vmatpush.msra.mxu0 0.0
  %777 = vmatpush.msra.mxu0 0.0
  %778 = vmatpush.msra.mxu0 0.0
  %779 = vmatpush.msra.mxu0 0.0
  %780 = vmatpush.msra.mxu0 0.0
  %781 = vmatpush.msra.mxu0 0.0
  %782 = vmatpush.msra.mxu0 0.0
  %783 = vmatpush.msra.mxu0 0.0
  %784 = vmatpush.msra.mxu0 0.0
  %785 = vmatpush.msra.mxu0 0.0
  %786 = vmatpush.msra.mxu0 0.0
  %787 = vmatpush.msra.mxu0 0.0
  %788 = vmatpush.msra.mxu0 0.0
  %789 = vmatpush.msra.mxu0 0.0
  %790 = vmatpush.msra.mxu0 0.0
  %791 = vmatpush.msra.mxu0 %v771
  %792 = vmatmul.f32.gmra.mxu0 %v774
  %v793 = vpop.f32.mrf.mxu0
  %v794 = vadd.f32 0.0, %v793
  %795 = vdwg.mxu0
  %v797 = vsel %vm184, %v768, 0
  %v800 = vsel %vm184, %v794, 0
  %802 = vmatpush.msra.mxu0 0.0
  %803 = vmatpush.msra.mxu0 0.0
  %804 = vmatpush.msra.mxu0 0.0
  %805 = vmatpush.msra.mxu0 0.0
  %806 = vmatpush.msra.mxu0 0.0
  %807 = vmatpush.msra.mxu0 0.0
  %808 = vmatpush.msra.mxu0 0.0
  %809 = vmatpush.msra.mxu0 0.0
  %810 = vmatpush.msra.mxu0 0.0
  %811 = vmatpush.msra.mxu0 0.0
  %812 = vmatpush.msra.mxu0 0.0
  %813 = vmatpush.msra.mxu0 0.0
  %814 = vmatpush.msra.mxu0 0.0
  %815 = vmatpush.msra.mxu0 0.0
  %816 = vmatpush.msra.mxu0 0.0
  %817 = vmatpush.msra.mxu0 %v173
  %818 = vmatmul.f32.gmra.mxu0 %v797
  %v819 = vpop.f32.mrf.mxu0
  %v820 = vadd.f32 0.0, %v819
  %821 = vmatmul.f32.gmra.mxu0 %v800
  %v822 = vpop.f32.mrf.mxu0
  %v823 = vadd.f32 0.0, %v822
  %824 = vdwg.mxu0
  %v825 = vadd.f32 %v664, %v820
  %v826 = vadd.f32 %v665, %v823
  %v827 = vadd.f32 %v825, %v129
  %v828 = vadd.f32 %v826, %v130
  %v829 = vld [vmem:[%s8] sm:$0x1]
  %v830 = vld [vmem:[%s9] sm:$0x1]
  %v831 = vsel %vm69, %v827, 0.0
  %832 = vadd.xlane.f32.xlu0 %v831
  %v833 = vpop.xlane.xlu0 %832
  %v834 = vsel %vm69, %v828, 0.0
  %835 = vadd.xlane.f32.xlu0 %v834
  %v836 = vpop.xlane.xlu0 %835
  %v837 = vmul.f32 %v833, %v82
  %v838 = vmul.f32 %v836, %v82
  %v839 = vsub.f32 %v827, %v837
  %v840 = vsub.f32 %v828, %v838
  %v841 = vmul.f32 %v839, %v839
  %v842 = vmul.f32 %v840, %v840
  %v843 = vsel %vm69, %v841, 0.0
  %844 = vadd.xlane.f32.xlu0 %v843
  %v845 = vpop.xlane.xlu0 %844
  %v846 = vsel %vm69, %v842, 0.0
  %847 = vadd.xlane.f32.xlu0 %v846
  %v848 = vpop.xlane.xlu0 %847
  %v849 = vmul.f32 %v845, %v82
  %v850 = vmul.f32 %v848, %v82
  %v851 = vadd.f32 %v849, 1e-12
  %v852 = vadd.f32 %v850, 1e-12
  %v853 = vrsqrt.pop %v851
  %v854 = vmul.f32 %v853, %v851
  %v855 = vmul.f32 %v854, %v853
  %v856 = vmul.f32 0.5, %v855
  %v857 = vsub.f32 1.5, %v856
  %v858 = vmul.f32 %v853, %v857
  %vm859 = vweird.f32 %v851
  %vm860 = vweird.f32 %v853
  %vm861 = vmor %vm859, %vm860
  %v862 = vsel %vm861, %v853, %v858
  %v863 = vrsqrt.pop %v852
  %v864 = vmul.f32 %v863, %v852
  %v865 = vmul.f32 %v864, %v863
  %v866 = vmul.f32 0.5, %v865
  %v867 = vsub.f32 1.5, %v866
  %v868 = vmul.f32 %v863, %v867
  %vm869 = vweird.f32 %v852
  %vm870 = vweird.f32 %v863
  %vm871 = vmor %vm869, %vm870
  %v872 = vsel %vm871, %v863, %v868
  %v873 = vmul.f32 %v839, %v862
  %v874 = vmul.f32 %v840, %v872
  %v876 = vperm.slane %v829, 0
  %v878 = vmul.f32 %v873, %v876
  %v879 = vmul.f32 %v874, %v876
  %v881 = vperm.slane %v830, 0
  %v883 = vadd.f32 %v878, %v881
  %v884 = vadd.f32 %v879, %v881
  %v885 = vld [vmem:[%s10] sm:$0xff]
  %v886 = vld [vmem:[%s10 + $0x8] sm:$0xff]
  %v887 = vld [vmem:[%s10 + $0x10] sm:$0xff]
  %v888 = vld [vmem:[%s10 + $0x18] sm:$0xff]
  %v889 = vld [vmem:[%s11] sm:$0x1]
  %v891 = vperm.slane %v889, 0
  %v894 = vsel %vm69, %v883, 0
  %v897 = vsel %vm69, %v884, 0
  %899 = vmatpush.msra.mxu0 0.0
  %900 = vmatpush.msra.mxu0 0.0
  %901 = vmatpush.msra.mxu0 0.0
  %902 = vmatpush.msra.mxu0 0.0
  %903 = vmatpush.msra.mxu0 0.0
  %904 = vmatpush.msra.mxu0 0.0
  %905 = vmatpush.msra.mxu0 0.0
  %906 = vmatpush.msra.mxu0 0.0
  %907 = vmatpush.msra.mxu0 0.0
  %908 = vmatpush.msra.mxu0 0.0
  %909 = vmatpush.msra.mxu0 0.0
  %910 = vmatpush.msra.mxu0 0.0
  %911 = vmatpush.msra.mxu0 %v888
  %912 = vmatpush.msra.mxu0 %v887
  %913 = vmatpush.msra.mxu0 %v886
  %914 = vmatpush.msra.mxu0 %v885
  %915 = vmatmul.f32.gmra.mxu0 %v894
  %v916 = vpop.f32.mrf.mxu0
  %v917 = vadd.f32 %v891, %v916
  %918 = vmatmul.f32.gmra.mxu0 %v897
  %v919 = vpop.f32.mrf.mxu0
  %v920 = vadd.f32 %v891, %v919
  %921 = vdwg.mxu0
  %v922 = vmul.f32 %v917, 0.5
  %v923 = vmul.f32 %v920, 0.5
  %v924 = vmul.f32 %v917, 0.044715
  %v925 = vmul.f32 %v920, 0.044715
  %v926 = vmul.f32 %v924, %v917
  %v927 = vmul.f32 %v925, %v920
  %v928 = vmul.f32 %v926, %v917
  %v929 = vmul.f32 %v927, %v920
  %v930 = vadd.f32 %v917, %v928
  %v931 = vadd.f32 %v920, %v929
  %v932 = vmul.f32 %v930, 0.7978846
  %v933 = vmul.f32 %v931, 0.7978846
  %v934 = vtanh.pop %v932
  %v935 = vtanh.pop %v933
  %v936 = vadd.f32 %v934, 1.0
  %v937 = vadd.f32 %v935, 1.0
  %v938 = vmul.f32 %v922, %v936
  %v939 = vmul.f32 %v923, %v937
  %v940 = vld [vmem:[%s12] sm:$0xff]
  %v941 = vld [vmem:[%s12 + $0x8] sm:$0xff]
  %v942 = vld [vmem:[%s12 + $0x10] sm:$0xff]
  %v943 = vld [vmem:[%s12 + $0x18] sm:$0xff]
  %v944 = vld [vmem:[%s12 + $0x20] sm:$0xff]
  %v945 = vld [vmem:[%s12 + $0x28] sm:$0xff]
  %v946 = vld [vmem:[%s12 + $0x30] sm:$0xff]
  %v947 = vld [vmem:[%s12 + $0x38] sm:$0xff]
  %v948 = vld [vmem:[%s12 + $0x40] sm:$0xff]
  %v949 = vld [vmem:[%s12 + $0x48] sm:$0xff]
  %v950 = vld [vmem:[%s12 + $0x50] sm:$0xff]
  %v951 = vld [vmem:[%s12 + $0x58] sm:$0xff]
  %v952 = vld [vmem:[%s12 + $0x60] sm:$0xff]
  %v953 = vld [vmem:[%s12 + $0x68] sm:$0xff]
  %v954 = vld [vmem:[%s12 + $0x70] sm:$0xff]
  %v955 = vld [vmem:[%s12 + $0x78] sm:$0xff]
  %v956 = vld [vmem:[%s13] sm:$0x1]
  %v958 = vperm.slane %v956, 0
  %960 = vmatpush.msra.mxu0 %v955
  %961 = vmatpush.msra.mxu0 %v954
  %962 = vmatpush.msra.mxu0 %v953
  %963 = vmatpush.msra.mxu0 %v952
  %964 = vmatpush.msra.mxu0 %v951
  %965 = vmatpush.msra.mxu0 %v950
  %966 = vmatpush.msra.mxu0 %v949
  %967 = vmatpush.msra.mxu0 %v948
  %968 = vmatpush.msra.mxu0 %v947
  %969 = vmatpush.msra.mxu0 %v946
  %970 = vmatpush.msra.mxu0 %v945
  %971 = vmatpush.msra.mxu0 %v944
  %972 = vmatpush.msra.mxu0 %v943
  %973 = vmatpush.msra.mxu0 %v942
  %974 = vmatpush.msra.mxu0 %v941
  %975 = vmatpush.msra.mxu0 %v940
  %976 = vmatmul.f32.gmra.mxu0 %v938
  %v977 = vpop.f32.mrf.mxu0
  %v978 = vadd.f32 %v958, %v977
  %979 = vmatmul.f32.gmra.mxu0 %v939
  %v980 = vpop.f32.mrf.mxu0
  %v981 = vadd.f32 %v958, %v980
  %982 = vdwg.mxu0
  %v983 = vadd.f32 %v978, %v883
  %v984 = vadd.f32 %v981, %v884
  %v985 = vld [vmem:[%s14] sm:$0x1]
  %v986 = vld [vmem:[%s15] sm:$0x1]
  %v987 = vsel %vm69, %v983, 0.0
  %988 = vadd.xlane.f32.xlu0 %v987
  %v989 = vpop.xlane.xlu0 %988
  %v990 = vsel %vm69, %v984, 0.0
  %991 = vadd.xlane.f32.xlu0 %v990
  %v992 = vpop.xlane.xlu0 %991
  %v993 = vmul.f32 %v989, %v82
  %v994 = vmul.f32 %v992, %v82
  %v995 = vsub.f32 %v983, %v993
  %v996 = vsub.f32 %v984, %v994
  %v997 = vmul.f32 %v995, %v995
  %v998 = vmul.f32 %v996, %v996
  %v999 = vsel %vm69, %v997, 0.0
  %1000 = vadd.xlane.f32.xlu0 %v999
  %v1001 = vpop.xlane.xlu0 %1000
  %v1002 = vsel %vm69, %v998, 0.0
  %1003 = vadd.xlane.f32.xlu0 %v1002
  %v1004 = vpop.xlane.xlu0 %1003
  %v1005 = vmul.f32 %v1001, %v82
  %v1006 = vmul.f32 %v1004, %v82
  %v1007 = vadd.f32 %v1005, 1e-12
  %v1008 = vadd.f32 %v1006, 1e-12
  %v1009 = vrsqrt.pop %v1007
  %v1010 = vmul.f32 %v1009, %v1007
  %v1011 = vmul.f32 %v1010, %v1009
  %v1012 = vmul.f32 0.5, %v1011
  %v1013 = vsub.f32 1.5, %v1012
  %v1014 = vmul.f32 %v1009, %v1013
  %vm1015 = vweird.f32 %v1007
  %vm1016 = vweird.f32 %v1009
  %vm1017 = vmor %vm1015, %vm1016
  %v1018 = vsel %vm1017, %v1009, %v1014
  %v1019 = vrsqrt.pop %v1008
  %v1020 = vmul.f32 %v1019, %v1008
  %v1021 = vmul.f32 %v1020, %v1019
  %v1022 = vmul.f32 0.5, %v1021
  %v1023 = vsub.f32 1.5, %v1022
  %v1024 = vmul.f32 %v1019, %v1023
  %vm1025 = vweird.f32 %v1008
  %vm1026 = vweird.f32 %v1019
  %vm1027 = vmor %vm1025, %vm1026
  %v1028 = vsel %vm1027, %v1019, %v1024
  %v1029 = vmul.f32 %v995, %v1018
  %v1030 = vmul.f32 %v996, %v1028
  %v1032 = vperm.slane %v985, 0
  %v1034 = vmul.f32 %v1029, %v1032
  %v1035 = vmul.f32 %v1030, %v1032
  %v1037 = vperm.slane %v986, 0
  %v1039 = vadd.f32 %v1034, %v1037
  %v1040 = vadd.f32 %v1035, %v1037
  %s1041 = scalar_lea.vmem %s4, 32
  %v1042 = vld [vmem:[%s1041] sm:$0xff]
  %v1043 = vld [vmem:[%s1041 + $0x8] sm:$0xff]
  %v1044 = vld [vmem:[%s1041 + $0x10] sm:$0xff]
  %v1045 = vld [vmem:[%s1041 + $0x18] sm:$0xff]
  %s1046 = scalar_lea.vmem %s5, 1
  %v1047 = vld [vmem:[%s1046] sm:$0x1]
  %v1049 = vperm.slane %v1047, 0
  %v1052 = vsel %vm69, %v1039, 0
  %v1055 = vsel %vm69, %v1040, 0
  %1057 = vmatpush.msra.mxu0 0.0
  %1058 = vmatpush.msra.mxu0 0.0
  %1059 = vmatpush.msra.mxu0 0.0
  %1060 = vmatpush.msra.mxu0 0.0
  %1061 = vmatpush.msra.mxu0 0.0
  %1062 = vmatpush.msra.mxu0 0.0
  %1063 = vmatpush.msra.mxu0 0.0
  %1064 = vmatpush.msra.mxu0 0.0
  %1065 = vmatpush.msra.mxu0 0.0
  %1066 = vmatpush.msra.mxu0 0.0
  %1067 = vmatpush.msra.mxu0 0.0
  %1068 = vmatpush.msra.mxu0 0.0
  %1069 = vmatpush.msra.mxu0 %v1045
  %1070 = vmatpush.msra.mxu0 %v1044
  %1071 = vmatpush.msra.mxu0 %v1043
  %1072 = vmatpush.msra.mxu0 %v1042
  %1073 = vmatmul.f32.gmra.mxu0 %v1052
  %v1074 = vpop.f32.mrf.mxu0
  %v1075 = vadd.f32 %v1049, %v1074
  %1076 = vmatmul.f32.gmra.mxu0 %v1055
  %v1077 = vpop.f32.mrf.mxu0
  %v1078 = vadd.f32 %v1049, %v1077
  %1079 = vdwg.mxu0
  %s1080 = scalar_lea.vmem %s6, 32
  %v1081 = vld [vmem:[%s1080] sm:$0xff]
  %v1082 = vld [vmem:[%s1080 + $0x8] sm:$0xff]
  %v1083 = vld [vmem:[%s1080 + $0x10] sm:$0xff]
  %v1084 = vld [vmem:[%s1080 + $0x18] sm:$0xff]
  %s1085 = scalar_lea.vmem %s7, 1
  %v1086 = vld [vmem:[%s1085] sm:$0x1]
  %1088 = vrot.lane.b32.xlu0 %v1075, 96
  %v1089 = vpop.permute.xlu0 %1088
  %v1090 = vsel %vm184, %v1075, 0
  %v1092 = vsel %vm184, %v1089, 0
  %1094 = vmatpush.xpose.msra.mxu0 0.0
  %1095 = vmatpush.xpose.msra.mxu0 0.0
  %1096 = vmatpush.xpose.msra.mxu0 0.0
  %1097 = vmatpush.xpose.msra.mxu0 0.0
  %1098 = vmatpush.xpose.msra.mxu0 0.0
  %1099 = vmatpush.xpose.msra.mxu0 0.0
  %1100 = vmatpush.xpose.msra.mxu0 0.0
  %1101 = vmatpush.xpose.msra.mxu0 0.0
  %1102 = vmatpush.xpose.msra.mxu0 0.0
  %1103 = vmatpush.xpose.msra.mxu0 0.0
  %1104 = vmatpush.xpose.msra.mxu0 0.0
  %1105 = vmatpush.xpose.msra.mxu0 0.0
  %1106 = vmatpush.xpose.msra.mxu0 0.0
  %1107 = vmatpush.xpose.msra.mxu0 0.0
  %1108 = vmatpush.xpose.msra.mxu0 0.0
  %1109 = vmatpush.xpose.msra.mxu0 %v1092
  %1110 = vmatmul.f32.gmra.mxu0 %v1090
  %v1111 = vpop.f32.mrf.mxu0
  %v1112 = vadd.f32 %v177, %v1111
  %1113 = vdwg.mxu0
  %1115 = vrot.lane.b32.xlu0 %v1078, 96
  %v1116 = vpop.permute.xlu0 %1115
  %v1117 = vsel %vm184, %v1078, 0
  %v1119 = vsel %vm184, %v1116, 0
  %1121 = vmatpush.xpose.msra.mxu0 0.0
  %1122 = vmatpush.xpose.msra.mxu0 0.0
  %1123 = vmatpush.xpose.msra.mxu0 0.0
  %1124 = vmatpush.xpose.msra.mxu0 0.0
  %1125 = vmatpush.xpose.msra.mxu0 0.0
  %1126 = vmatpush.xpose.msra.mxu0 0.0
  %1127 = vmatpush.xpose.msra.mxu0 0.0
  %1128 = vmatpush.xpose.msra.mxu0 0.0
  %1129 = vmatpush.xpose.msra.mxu0 0.0
  %1130 = vmatpush.xpose.msra.mxu0 0.0
  %1131 = vmatpush.xpose.msra.mxu0 0.0
  %1132 = vmatpush.xpose.msra.mxu0 0.0
  %1133 = vmatpush.xpose.msra.mxu0 0.0
  %1134 = vmatpush.xpose.msra.mxu0 0.0
  %1135 = vmatpush.xpose.msra.mxu0 0.0
  %1136 = vmatpush.xpose.msra.mxu0 %v1119
  %1137 = vmatmul.f32.gmra.mxu0 %v1117
  %v1138 = vpop.f32.mrf.mxu0
  %v1139 = vadd.f32 %v178, %v1138
  %1140 = vdwg.mxu0
  %v1141 = vsel %vm184, %v1112, -inf
  %1142 = vmax.xlane.f32.xlu0 %v1141
  %v1143 = vpop.xlane.xlu0 %1142
  %v1144 = vsel %vm184, %v1139, -inf
  %1145 = vmax.xlane.f32.xlu0 %v1144
  %v1146 = vpop.xlane.xlu0 %1145
  %v1147 = vsub.f32 %v1112, %v1143
  %v1148 = vsub.f32 %v1139, %v1146
  %v1149 = vmul.f32 %v1147, 1.442695
  %v1150 = vpow.pop %v1149
  %v1151 = vmul.f32 %v1148, 1.442695
  %v1152 = vpow.pop %v1151
  %v1153 = vsel %vm184, %v1150, 0.0
  %1154 = vadd.xlane.f32.xlu0 %v1153
  %v1155 = vpop.xlane.xlu0 %1154
  %v1156 = vsel %vm184, %v1152, 0.0
  %1157 = vadd.xlane.f32.xlu0 %v1156
  %v1158 = vpop.xlane.xlu0 %1157
  %v1159 = vrcp.pop %v1155
  %v1160 = vrcp.pop %v1158
  %v1161 = vmul.f32 %v1150, %v1159
  %v1162 = vmul.f32 %v1152, %v1160
  %1163 = vrot.lane.b32.xlu0 %v1075, 64
  %v1164 = vpop.permute.xlu0 %1163
  %v1167 = vsel %vm184, %v1161, 0
  %1169 = vmatpush.msra.mxu0 0.0
  %1170 = vmatpush.msra.mxu0 0.0
  %1171 = vmatpush.msra.mxu0 0.0
  %1172 = vmatpush.msra.mxu0 0.0
  %1173 = vmatpush.msra.mxu0 0.0
  %1174 = vmatpush.msra.mxu0 0.0
  %1175 = vmatpush.msra.mxu0 0.0
  %1176 = vmatpush.msra.mxu0 0.0
  %1177 = vmatpush.msra.mxu0 0.0
  %1178 = vmatpush.msra.mxu0 0.0
  %1179 = vmatpush.msra.mxu0 0.0
  %1180 = vmatpush.msra.mxu0 0.0
  %1181 = vmatpush.msra.mxu0 0.0
  %1182 = vmatpush.msra.mxu0 0.0
  %1183 = vmatpush.msra.mxu0 0.0
  %1184 = vmatpush.msra.mxu0 %v1164
  %1185 = vmatmul.f32.gmra.mxu0 %v1167
  %v1186 = vpop.f32.mrf.mxu0
  %v1187 = vadd.f32 0.0, %v1186
  %1188 = vdwg.mxu0
  %1189 = vrot.lane.b32.xlu0 %v1078, 64
  %v1190 = vpop.permute.xlu0 %1189
  %v1193 = vsel %vm184, %v1162, 0
  %1195 = vmatpush.msra.mxu0 0.0
  %1196 = vmatpush.msra.mxu0 0.0
  %1197 = vmatpush.msra.mxu0 0.0
  %1198 = vmatpush.msra.mxu0 0.0
  %1199 = vmatpush.msra.mxu0 0.0
  %1200 = vmatpush.msra.mxu0 0.0
  %1201 = vmatpush.msra.mxu0 0.0
  %1202 = vmatpush.msra.mxu0 0.0
  %1203 = vmatpush.msra.mxu0 0.0
  %1204 = vmatpush.msra.mxu0 0.0
  %1205 = vmatpush.msra.mxu0 0.0
  %1206 = vmatpush.msra.mxu0 0.0
  %1207 = vmatpush.msra.mxu0 0.0
  %1208 = vmatpush.msra.mxu0 0.0
  %1209 = vmatpush.msra.mxu0 0.0
  %1210 = vmatpush.msra.mxu0 %v1190
  %1211 = vmatmul.f32.gmra.mxu0 %v1193
  %v1212 = vpop.f32.mrf.mxu0
  %v1213 = vadd.f32 0.0, %v1212
  %1214 = vdwg.mxu0
  %v1216 = vsel %vm184, %v1187, 0
  %v1219 = vsel %vm184, %v1213, 0
  %1221 = vmatpush.msra.mxu0 0.0
  %1222 = vmatpush.msra.mxu0 0.0
  %1223 = vmatpush.msra.mxu0 0.0
  %1224 = vmatpush.msra.mxu0 0.0
  %1225 = vmatpush.msra.mxu0 0.0
  %1226 = vmatpush.msra.mxu0 0.0
  %1227 = vmatpush.msra.mxu0 0.0
  %1228 = vmatpush.msra.mxu0 0.0
  %1229 = vmatpush.msra.mxu0 0.0
  %1230 = vmatpush.msra.mxu0 0.0
  %1231 = vmatpush.msra.mxu0 0.0
  %1232 = vmatpush.msra.mxu0 0.0
  %1233 = vmatpush.msra.mxu0 0.0
  %1234 = vmatpush.msra.mxu0 0.0
  %1235 = vmatpush.msra.mxu0 0.0
  %1236 = vmatpush.msra.mxu0 %v1081
  %1237 = vmatmul.f32.gmra.mxu0 %v1216
  %v1238 = vpop.f32.mrf.mxu0
  %v1239 = vadd.f32 0.0, %v1238
  %1240 = vmatmul.f32.gmra.mxu0 %v1219
  %v1241 = vpop.f32.mrf.mxu0
  %v1242 = vadd.f32 0.0, %v1241
  %1243 = vdwg.mxu0
  %v1245 = vperm.slane %v1086, 0
  %v1247 = vadd.f32 %v1245, %v1239
  %v1248 = vadd.f32 %v1245, %v1242
  %1249 = vrot.lane.b32.xlu0 %v1075, 120
  %v1250 = vpop.permute.xlu0 %1249
  %1251 = vrot.lane.b32.xlu0 %v1075, 88
  %v1252 = vpop.permute.xlu0 %1251
  %v1253 = vsel %vm184, %v1250, 0
  %v1255 = vsel %vm184, %v1252, 0
  %1257 = vmatpush.xpose.msra.mxu0 0.0
  %1258 = vmatpush.xpose.msra.mxu0 0.0
  %1259 = vmatpush.xpose.msra.mxu0 0.0
  %1260 = vmatpush.xpose.msra.mxu0 0.0
  %1261 = vmatpush.xpose.msra.mxu0 0.0
  %1262 = vmatpush.xpose.msra.mxu0 0.0
  %1263 = vmatpush.xpose.msra.mxu0 0.0
  %1264 = vmatpush.xpose.msra.mxu0 0.0
  %1265 = vmatpush.xpose.msra.mxu0 0.0
  %1266 = vmatpush.xpose.msra.mxu0 0.0
  %1267 = vmatpush.xpose.msra.mxu0 0.0
  %1268 = vmatpush.xpose.msra.mxu0 0.0
  %1269 = vmatpush.xpose.msra.mxu0 0.0
  %1270 = vmatpush.xpose.msra.mxu0 0.0
  %1271 = vmatpush.xpose.msra.mxu0 0.0
  %1272 = vmatpush.xpose.msra.mxu0 %v1255
  %1273 = vmatmul.f32.gmra.mxu0 %v1253
  %v1274 = vpop.f32.mrf.mxu0
  %v1275 = vadd.f32 %v177, %v1274
  %1276 = vdwg.mxu0
  %1277 = vrot.lane.b32.xlu0 %v1078, 120
  %v1278 = vpop.permute.xlu0 %1277
  %1279 = vrot.lane.b32.xlu0 %v1078, 88
  %v1280 = vpop.permute.xlu0 %1279
  %v1281 = vsel %vm184, %v1278, 0
  %v1283 = vsel %vm184, %v1280, 0
  %1285 = vmatpush.xpose.msra.mxu0 0.0
  %1286 = vmatpush.xpose.msra.mxu0 0.0
  %1287 = vmatpush.xpose.msra.mxu0 0.0
  %1288 = vmatpush.xpose.msra.mxu0 0.0
  %1289 = vmatpush.xpose.msra.mxu0 0.0
  %1290 = vmatpush.xpose.msra.mxu0 0.0
  %1291 = vmatpush.xpose.msra.mxu0 0.0
  %1292 = vmatpush.xpose.msra.mxu0 0.0
  %1293 = vmatpush.xpose.msra.mxu0 0.0
  %1294 = vmatpush.xpose.msra.mxu0 0.0
  %1295 = vmatpush.xpose.msra.mxu0 0.0
  %1296 = vmatpush.xpose.msra.mxu0 0.0
  %1297 = vmatpush.xpose.msra.mxu0 0.0
  %1298 = vmatpush.xpose.msra.mxu0 0.0
  %1299 = vmatpush.xpose.msra.mxu0 0.0
  %1300 = vmatpush.xpose.msra.mxu0 %v1283
  %1301 = vmatmul.f32.gmra.mxu0 %v1281
  %v1302 = vpop.f32.mrf.mxu0
  %v1303 = vadd.f32 %v178, %v1302
  %1304 = vdwg.mxu0
  %v1305 = vsel %vm184, %v1275, -inf
  %1306 = vmax.xlane.f32.xlu0 %v1305
  %v1307 = vpop.xlane.xlu0 %1306
  %v1308 = vsel %vm184, %v1303, -inf
  %1309 = vmax.xlane.f32.xlu0 %v1308
  %v1310 = vpop.xlane.xlu0 %1309
  %v1311 = vsub.f32 %v1275, %v1307
  %v1312 = vsub.f32 %v1303, %v1310
  %v1313 = vmul.f32 %v1311, 1.442695
  %v1314 = vpow.pop %v1313
  %v1315 = vmul.f32 %v1312, 1.442695
  %v1316 = vpow.pop %v1315
  %v1317 = vsel %vm184, %v1314, 0.0
  %1318 = vadd.xlane.f32.xlu0 %v1317
  %v1319 = vpop.xlane.xlu0 %1318
  %v1320 = vsel %vm184, %v1316, 0.0
  %1321 = vadd.xlane.f32.xlu0 %v1320
  %v1322 = vpop.xlane.xlu0 %1321
  %v1323 = vrcp.pop %v1319
  %v1324 = vrcp.pop %v1322
  %v1325 = vmul.f32 %v1314, %v1323
  %v1326 = vmul.f32 %v1316, %v1324
  %1327 = vrot.lane.b32.xlu0 %v1075, 56
  %v1328 = vpop.permute.xlu0 %1327
  %v1331 = vsel %vm184, %v1325, 0
  %1333 = vmatpush.msra.mxu0 0.0
  %1334 = vmatpush.msra.mxu0 0.0
  %1335 = vmatpush.msra.mxu0 0.0
  %1336 = vmatpush.msra.mxu0 0.0
  %1337 = vmatpush.msra.mxu0 0.0
  %1338 = vmatpush.msra.mxu0 0.0
  %1339 = vmatpush.msra.mxu0 0.0
  %1340 = vmatpush.msra.mxu0 0.0
  %1341 = vmatpush.msra.mxu0 0.0
  %1342 = vmatpush.msra.mxu0 0.0
  %1343 = vmatpush.msra.mxu0 0.0
  %1344 = vmatpush.msra.mxu0 0.0
  %1345 = vmatpush.msra.mxu0 0.0
  %1346 = vmatpush.msra.mxu0 0.0
  %1347 = vmatpush.msra.mxu0 0.0
  %1348 = vmatpush.msra.mxu0 %v1328
  %1349 = vmatmul.f32.gmra.mxu0 %v1331
  %v1350 = vpop.f32.mrf.mxu0
  %v1351 = vadd.f32 0.0, %v1350
  %1352 = vdwg.mxu0
  %1353 = vrot.lane.b32.xlu0 %v1078, 56
  %v1354 = vpop.permute.xlu0 %1353
  %v1357 = vsel %vm184, %v1326, 0
  %1359 = vmatpush.msra.mxu0 0.0
  %1360 = vmatpush.msra.mxu0 0.0
  %1361 = vmatpush.msra.mxu0 0.0
  %1362 = vmatpush.msra.mxu0 0.0
  %1363 = vmatpush.msra.mxu0 0.0
  %1364 = vmatpush.msra.mxu0 0.0
  %1365 = vmatpush.msra.mxu0 0.0
  %1366 = vmatpush.msra.mxu0 0.0
  %1367 = vmatpush.msra.mxu0 0.0
  %1368 = vmatpush.msra.mxu0 0.0
  %1369 = vmatpush.msra.mxu0 0.0
  %1370 = vmatpush.msra.mxu0 0.0
  %1371 = vmatpush.msra.mxu0 0.0
  %1372 = vmatpush.msra.mxu0 0.0
  %1373 = vmatpush.msra.mxu0 0.0
  %1374 = vmatpush.msra.mxu0 %v1354
  %1375 = vmatmul.f32.gmra.mxu0 %v1357
  %v1376 = vpop.f32.mrf.mxu0
  %v1377 = vadd.f32 0.0, %v1376
  %1378 = vdwg.mxu0
  %v1380 = vsel %vm184, %v1351, 0
  %v1383 = vsel %vm184, %v1377, 0
  %1385 = vmatpush.msra.mxu0 0.0
  %1386 = vmatpush.msra.mxu0 0.0
  %1387 = vmatpush.msra.mxu0 0.0
  %1388 = vmatpush.msra.mxu0 0.0
  %1389 = vmatpush.msra.mxu0 0.0
  %1390 = vmatpush.msra.mxu0 0.0
  %1391 = vmatpush.msra.mxu0 0.0
  %1392 = vmatpush.msra.mxu0 0.0
  %1393 = vmatpush.msra.mxu0 0.0
  %1394 = vmatpush.msra.mxu0 0.0
  %1395 = vmatpush.msra.mxu0 0.0
  %1396 = vmatpush.msra.mxu0 0.0
  %1397 = vmatpush.msra.mxu0 0.0
  %1398 = vmatpush.msra.mxu0 0.0
  %1399 = vmatpush.msra.mxu0 0.0
  %1400 = vmatpush.msra.mxu0 %v1082
  %1401 = vmatmul.f32.gmra.mxu0 %v1380
  %v1402 = vpop.f32.mrf.mxu0
  %v1403 = vadd.f32 0.0, %v1402
  %1404 = vmatmul.f32.gmra.mxu0 %v1383
  %v1405 = vpop.f32.mrf.mxu0
  %v1406 = vadd.f32 0.0, %v1405
  %1407 = vdwg.mxu0
  %v1408 = vadd.f32 %v1247, %v1403
  %v1409 = vadd.f32 %v1248, %v1406
  %1410 = vrot.lane.b32.xlu0 %v1075, 112
  %v1411 = vpop.permute.xlu0 %1410
  %1412 = vrot.lane.b32.xlu0 %v1075, 80
  %v1413 = vpop.permute.xlu0 %1412
  %v1414 = vsel %vm184, %v1411, 0
  %v1416 = vsel %vm184, %v1413, 0
  %1418 = vmatpush.xpose.msra.mxu0 0.0
  %1419 = vmatpush.xpose.msra.mxu0 0.0
  %1420 = vmatpush.xpose.msra.mxu0 0.0
  %1421 = vmatpush.xpose.msra.mxu0 0.0
  %1422 = vmatpush.xpose.msra.mxu0 0.0
  %1423 = vmatpush.xpose.msra.mxu0 0.0
  %1424 = vmatpush.xpose.msra.mxu0 0.0
  %1425 = vmatpush.xpose.msra.mxu0 0.0
  %1426 = vmatpush.xpose.msra.mxu0 0.0
  %1427 = vmatpush.xpose.msra.mxu0 0.0
  %1428 = vmatpush.xpose.msra.mxu0 0.0
  %1429 = vmatpush.xpose.msra.mxu0 0.0
  %1430 = vmatpush.xpose.msra.mxu0 0.0
  %1431 = vmatpush.xpose.msra.mxu0 0.0
  %1432 = vmatpush.xpose.msra.mxu0 0.0
  %1433 = vmatpush.xpose.msra.mxu0 %v1416
  %1434 = vmatmul.f32.gmra.mxu0 %v1414
  %v1435 = vpop.f32.mrf.mxu0
  %v1436 = vadd.f32 %v177, %v1435
  %1437 = vdwg.mxu0
  %1438 = vrot.lane.b32.xlu0 %v1078, 112
  %v1439 = vpop.permute.xlu0 %1438
  %1440 = vrot.lane.b32.xlu0 %v1078, 80
  %v1441 = vpop.permute.xlu0 %1440
  %v1442 = vsel %vm184, %v1439, 0
  %v1444 = vsel %vm184, %v1441, 0
  %1446 = vmatpush.xpose.msra.mxu0 0.0
  %1447 = vmatpush.xpose.msra.mxu0 0.0
  %1448 = vmatpush.xpose.msra.mxu0 0.0
  %1449 = vmatpush.xpose.msra.mxu0 0.0
  %1450 = vmatpush.xpose.msra.mxu0 0.0
  %1451 = vmatpush.xpose.msra.mxu0 0.0
  %1452 = vmatpush.xpose.msra.mxu0 0.0
  %1453 = vmatpush.xpose.msra.mxu0 0.0
  %1454 = vmatpush.xpose.msra.mxu0 0.0
  %1455 = vmatpush.xpose.msra.mxu0 0.0
  %1456 = vmatpush.xpose.msra.mxu0 0.0
  %1457 = vmatpush.xpose.msra.mxu0 0.0
  %1458 = vmatpush.xpose.msra.mxu0 0.0
  %1459 = vmatpush.xpose.msra.mxu0 0.0
  %1460 = vmatpush.xpose.msra.mxu0 0.0
  %1461 = vmatpush.xpose.msra.mxu0 %v1444
  %1462 = vmatmul.f32.gmra.mxu0 %v1442
  %v1463 = vpop.f32.mrf.mxu0
  %v1464 = vadd.f32 %v178, %v1463
  %1465 = vdwg.mxu0
  %v1466 = vsel %vm184, %v1436, -inf
  %1467 = vmax.xlane.f32.xlu0 %v1466
  %v1468 = vpop.xlane.xlu0 %1467
  %v1469 = vsel %vm184, %v1464, -inf
  %1470 = vmax.xlane.f32.xlu0 %v1469
  %v1471 = vpop.xlane.xlu0 %1470
  %v1472 = vsub.f32 %v1436, %v1468
  %v1473 = vsub.f32 %v1464, %v1471
  %v1474 = vmul.f32 %v1472, 1.442695
  %v1475 = vpow.pop %v1474
  %v1476 = vmul.f32 %v1473, 1.442695
  %v1477 = vpow.pop %v1476
  %v1478 = vsel %vm184, %v1475, 0.0
  %1479 = vadd.xlane.f32.xlu0 %v1478
  %v1480 = vpop.xlane.xlu0 %1479
  %v1481 = vsel %vm184, %v1477, 0.0
  %1482 = vadd.xlane.f32.xlu0 %v1481
  %v1483 = vpop.xlane.xlu0 %1482
  %v1484 = vrcp.pop %v1480
  %v1485 = vrcp.pop %v1483
  %v1486 = vmul.f32 %v1475, %v1484
  %v1487 = vmul.f32 %v1477, %v1485
  %1488 = vrot.lane.b32.xlu0 %v1075, 48
  %v1489 = vpop.permute.xlu0 %1488
  %v1492 = vsel %vm184, %v1486, 0
  %1494 = vmatpush.msra.mxu0 0.0
  %1495 = vmatpush.msra.mxu0 0.0
  %1496 = vmatpush.msra.mxu0 0.0
  %1497 = vmatpush.msra.mxu0 0.0
  %1498 = vmatpush.msra.mxu0 0.0
  %1499 = vmatpush.msra.mxu0 0.0
  %1500 = vmatpush.msra.mxu0 0.0
  %1501 = vmatpush.msra.mxu0 0.0
  %1502 = vmatpush.msra.mxu0 0.0
  %1503 = vmatpush.msra.mxu0 0.0
  %1504 = vmatpush.msra.mxu0 0.0
  %1505 = vmatpush.msra.mxu0 0.0
  %1506 = vmatpush.msra.mxu0 0.0
  %1507 = vmatpush.msra.mxu0 0.0
  %1508 = vmatpush.msra.mxu0 0.0
  %1509 = vmatpush.msra.mxu0 %v1489
  %1510 = vmatmul.f32.gmra.mxu0 %v1492
  %v1511 = vpop.f32.mrf.mxu0
  %v1512 = vadd.f32 0.0, %v1511
  %1513 = vdwg.mxu0
  %1514 = vrot.lane.b32.xlu0 %v1078, 48
  %v1515 = vpop.permute.xlu0 %1514
  %v1518 = vsel %vm184, %v1487, 0
  %1520 = vmatpush.msra.mxu0 0.0
  %1521 = vmatpush.msra.mxu0 0.0
  %1522 = vmatpush.msra.mxu0 0.0
  %1523 = vmatpush.msra.mxu0 0.0
  %1524 = vmatpush.msra.mxu0 0.0
  %1525 = vmatpush.msra.mxu0 0.0
  %1526 = vmatpush.msra.mxu0 0.0
  %1527 = vmatpush.msra.mxu0 0.0
  %1528 = vmatpush.msra.mxu0 0.0
  %1529 = vmatpush.msra.mxu0 0.0
  %1530 = vmatpush.msra.mxu0 0.0
  %1531 = vmatpush.msra.mxu0 0.0
  %1532 = vmatpush.msra.mxu0 0.0
  %1533 = vmatpush.msra.mxu0 0.0
  %1534 = vmatpush.msra.mxu0 0.0
  %1535 = vmatpush.msra.mxu0 %v1515
  %1536 = vmatmul.f32.gmra.mxu0 %v1518
  %v1537 = vpop.f32.mrf.mxu0
  %v1538 = vadd.f32 0.0, %v1537
  %1539 = vdwg.mxu0
  %v1541 = vsel %vm184, %v1512, 0
  %v1544 = vsel %vm184, %v1538, 0
  %1546 = vmatpush.msra.mxu0 0.0
  %1547 = vmatpush.msra.mxu0 0.0
  %1548 = vmatpush.msra.mxu0 0.0
  %1549 = vmatpush.msra.mxu0 0.0
  %1550 = vmatpush.msra.mxu0 0.0
  %1551 = vmatpush.msra.mxu0 0.0
  %1552 = vmatpush.msra.mxu0 0.0
  %1553 = vmatpush.msra.mxu0 0.0
  %1554 = vmatpush.msra.mxu0 0.0
  %1555 = vmatpush.msra.mxu0 0.0
  %1556 = vmatpush.msra.mxu0 0.0
  %1557 = vmatpush.msra.mxu0 0.0
  %1558 = vmatpush.msra.mxu0 0.0
  %1559 = vmatpush.msra.mxu0 0.0
  %1560 = vmatpush.msra.mxu0 0.0
  %1561 = vmatpush.msra.mxu0 %v1083
  %1562 = vmatmul.f32.gmra.mxu0 %v1541
  %v1563 = vpop.f32.mrf.mxu0
  %v1564 = vadd.f32 0.0, %v1563
  %1565 = vmatmul.f32.gmra.mxu0 %v1544
  %v1566 = vpop.f32.mrf.mxu0
  %v1567 = vadd.f32 0.0, %v1566
  %1568 = vdwg.mxu0
  %v1569 = vadd.f32 %v1408, %v1564
  %v1570 = vadd.f32 %v1409, %v1567
  %1571 = vrot.lane.b32.xlu0 %v1075, 104
  %v1572 = vpop.permute.xlu0 %1571
  %1573 = vrot.lane.b32.xlu0 %v1075, 72
  %v1574 = vpop.permute.xlu0 %1573
  %v1575 = vsel %vm184, %v1572, 0
  %v1577 = vsel %vm184, %v1574, 0
  %1579 = vmatpush.xpose.msra.mxu0 0.0
  %1580 = vmatpush.xpose.msra.mxu0 0.0
  %1581 = vmatpush.xpose.msra.mxu0 0.0
  %1582 = vmatpush.xpose.msra.mxu0 0.0
  %1583 = vmatpush.xpose.msra.mxu0 0.0
  %1584 = vmatpush.xpose.msra.mxu0 0.0
  %1585 = vmatpush.xpose.msra.mxu0 0.0
  %1586 = vmatpush.xpose.msra.mxu0 0.0
  %1587 = vmatpush.xpose.msra.mxu0 0.0
  %1588 = vmatpush.xpose.msra.mxu0 0.0
  %1589 = vmatpush.xpose.msra.mxu0 0.0
  %1590 = vmatpush.xpose.msra.mxu0 0.0
  %1591 = vmatpush.xpose.msra.mxu0 0.0
  %1592 = vmatpush.xpose.msra.mxu0 0.0
  %1593 = vmatpush.xpose.msra.mxu0 0.0
  %1594 = vmatpush.xpose.msra.mxu0 %v1577
  %1595 = vmatmul.f32.gmra.mxu0 %v1575
  %v1596 = vpop.f32.mrf.mxu0
  %v1597 = vadd.f32 %v177, %v1596
  %1598 = vdwg.mxu0
  %1599 = vrot.lane.b32.xlu0 %v1078, 104
  %v1600 = vpop.permute.xlu0 %1599
  %1601 = vrot.lane.b32.xlu0 %v1078, 72
  %v1602 = vpop.permute.xlu0 %1601
  %v1603 = vsel %vm184, %v1600, 0
  %v1605 = vsel %vm184, %v1602, 0
  %1607 = vmatpush.xpose.msra.mxu0 0.0
  %1608 = vmatpush.xpose.msra.mxu0 0.0
  %1609 = vmatpush.xpose.msra.mxu0 0.0
  %1610 = vmatpush.xpose.msra.mxu0 0.0
  %1611 = vmatpush.xpose.msra.mxu0 0.0
  %1612 = vmatpush.xpose.msra.mxu0 0.0
  %1613 = vmatpush.xpose.msra.mxu0 0.0
  %1614 = vmatpush.xpose.msra.mxu0 0.0
  %1615 = vmatpush.xpose.msra.mxu0 0.0
  %1616 = vmatpush.xpose.msra.mxu0 0.0
  %1617 = vmatpush.xpose.msra.mxu0 0.0
  %1618 = vmatpush.xpose.msra.mxu0 0.0
  %1619 = vmatpush.xpose.msra.mxu0 0.0
  %1620 = vmatpush.xpose.msra.mxu0 0.0
  %1621 = vmatpush.xpose.msra.mxu0 0.0
  %1622 = vmatpush.xpose.msra.mxu0 %v1605
  %1623 = vmatmul.f32.gmra.mxu0 %v1603
  %v1624 = vpop.f32.mrf.mxu0
  %v1625 = vadd.f32 %v178, %v1624
  %1626 = vdwg.mxu0
  %v1627 = vsel %vm184, %v1597, -inf
  %1628 = vmax.xlane.f32.xlu0 %v1627
  %v1629 = vpop.xlane.xlu0 %1628
  %v1630 = vsel %vm184, %v1625, -inf
  %1631 = vmax.xlane.f32.xlu0 %v1630
  %v1632 = vpop.xlane.xlu0 %1631
  %v1633 = vsub.f32 %v1597, %v1629
  %v1634 = vsub.f32 %v1625, %v1632
  %v1635 = vmul.f32 %v1633, 1.442695
  %v1636 = vpow.pop %v1635
  %v1637 = vmul.f32 %v1634, 1.442695
  %v1638 = vpow.pop %v1637
  %v1639 = vsel %vm184, %v1636, 0.0
  %1640 = vadd.xlane.f32.xlu0 %v1639
  %v1641 = vpop.xlane.xlu0 %1640
  %v1642 = vsel %vm184, %v1638, 0.0
  %1643 = vadd.xlane.f32.xlu0 %v1642
  %v1644 = vpop.xlane.xlu0 %1643
  %v1645 = vrcp.pop %v1641
  %v1646 = vrcp.pop %v1644
  %v1647 = vmul.f32 %v1636, %v1645
  %v1648 = vmul.f32 %v1638, %v1646
  %1649 = vrot.lane.b32.xlu0 %v1075, 40
  %v1650 = vpop.permute.xlu0 %1649
  %v1653 = vsel %vm184, %v1647, 0
  %1655 = vmatpush.msra.mxu0 0.0
  %1656 = vmatpush.msra.mxu0 0.0
  %1657 = vmatpush.msra.mxu0 0.0
  %1658 = vmatpush.msra.mxu0 0.0
  %1659 = vmatpush.msra.mxu0 0.0
  %1660 = vmatpush.msra.mxu0 0.0
  %1661 = vmatpush.msra.mxu0 0.0
  %1662 = vmatpush.msra.mxu0 0.0
  %1663 = vmatpush.msra.mxu0 0.0
  %1664 = vmatpush.msra.mxu0 0.0
  %1665 = vmatpush.msra.mxu0 0.0
  %1666 = vmatpush.msra.mxu0 0.0
  %1667 = vmatpush.msra.mxu0 0.0
  %1668 = vmatpush.msra.mxu0 0.0
  %1669 = vmatpush.msra.mxu0 0.0
  %1670 = vmatpush.msra.mxu0 %v1650
  %1671 = vmatmul.f32.gmra.mxu0 %v1653
  %v1672 = vpop.f32.mrf.mxu0
  %v1673 = vadd.f32 0.0, %v1672
  %1674 = vdwg.mxu0
  %1675 = vrot.lane.b32.xlu0 %v1078, 40
  %v1676 = vpop.permute.xlu0 %1675
  %v1679 = vsel %vm184, %v1648, 0
  %1681 = vmatpush.msra.mxu0 0.0
  %1682 = vmatpush.msra.mxu0 0.0
  %1683 = vmatpush.msra.mxu0 0.0
  %1684 = vmatpush.msra.mxu0 0.0
  %1685 = vmatpush.msra.mxu0 0.0
  %1686 = vmatpush.msra.mxu0 0.0
  %1687 = vmatpush.msra.mxu0 0.0
  %1688 = vmatpush.msra.mxu0 0.0
  %1689 = vmatpush.msra.mxu0 0.0
  %1690 = vmatpush.msra.mxu0 0.0
  %1691 = vmatpush.msra.mxu0 0.0
  %1692 = vmatpush.msra.mxu0 0.0
  %1693 = vmatpush.msra.mxu0 0.0
  %1694 = vmatpush.msra.mxu0 0.0
  %1695 = vmatpush.msra.mxu0 0.0
  %1696 = vmatpush.msra.mxu0 %v1676
  %1697 = vmatmul.f32.gmra.mxu0 %v1679
  %v1698 = vpop.f32.mrf.mxu0
  %v1699 = vadd.f32 0.0, %v1698
  %1700 = vdwg.mxu0
  %v1702 = vsel %vm184, %v1673, 0
  %v1705 = vsel %vm184, %v1699, 0
  %1707 = vmatpush.msra.mxu0 0.0
  %1708 = vmatpush.msra.mxu0 0.0
  %1709 = vmatpush.msra.mxu0 0.0
  %1710 = vmatpush.msra.mxu0 0.0
  %1711 = vmatpush.msra.mxu0 0.0
  %1712 = vmatpush.msra.mxu0 0.0
  %1713 = vmatpush.msra.mxu0 0.0
  %1714 = vmatpush.msra.mxu0 0.0
  %1715 = vmatpush.msra.mxu0 0.0
  %1716 = vmatpush.msra.mxu0 0.0
  %1717 = vmatpush.msra.mxu0 0.0
  %1718 = vmatpush.msra.mxu0 0.0
  %1719 = vmatpush.msra.mxu0 0.0
  %1720 = vmatpush.msra.mxu0 0.0
  %1721 = vmatpush.msra.mxu0 0.0
  %1722 = vmatpush.msra.mxu0 %v1084
  %1723 = vmatmul.f32.gmra.mxu0 %v1702
  %v1724 = vpop.f32.mrf.mxu0
  %v1725 = vadd.f32 0.0, %v1724
  %1726 = vmatmul.f32.gmra.mxu0 %v1705
  %v1727 = vpop.f32.mrf.mxu0
  %v1728 = vadd.f32 0.0, %v1727
  %1729 = vdwg.mxu0
  %v1730 = vadd.f32 %v1569, %v1725
  %v1731 = vadd.f32 %v1570, %v1728
  %v1732 = vadd.f32 %v1730, %v1039
  %v1733 = vadd.f32 %v1731, %v1040
  %s1734 = scalar_lea.vmem %s8, 1
  %v1735 = vld [vmem:[%s1734] sm:$0x1]
  %s1736 = scalar_lea.vmem %s9, 1
  %v1737 = vld [vmem:[%s1736] sm:$0x1]
  %v1738 = vsel %vm69, %v1732, 0.0
  %1739 = vadd.xlane.f32.xlu0 %v1738
  %v1740 = vpop.xlane.xlu0 %1739
  %v1741 = vsel %vm69, %v1733, 0.0
  %1742 = vadd.xlane.f32.xlu0 %v1741
  %v1743 = vpop.xlane.xlu0 %1742
  %v1744 = vmul.f32 %v1740, %v82
  %v1745 = vmul.f32 %v1743, %v82
  %v1746 = vsub.f32 %v1732, %v1744
  %v1747 = vsub.f32 %v1733, %v1745
  %v1748 = vmul.f32 %v1746, %v1746
  %v1749 = vmul.f32 %v1747, %v1747
  %v1750 = vsel %vm69, %v1748, 0.0
  %1751 = vadd.xlane.f32.xlu0 %v1750
  %v1752 = vpop.xlane.xlu0 %1751
  %v1753 = vsel %vm69, %v1749, 0.0
  %1754 = vadd.xlane.f32.xlu0 %v1753
  %v1755 = vpop.xlane.xlu0 %1754
  %v1756 = vmul.f32 %v1752, %v82
  %v1757 = vmul.f32 %v1755, %v82
  %v1758 = vadd.f32 %v1756, 1e-12
  %v1759 = vadd.f32 %v1757, 1e-12
  %v1760 = vrsqrt.pop %v1758
  %v1761 = vmul.f32 %v1760, %v1758
  %v1762 = vmul.f32 %v1761, %v1760
  %v1763 = vmul.f32 0.5, %v1762
  %v1764 = vsub.f32 1.5, %v1763
  %v1765 = vmul.f32 %v1760, %v1764
  %vm1766 = vweird.f32 %v1758
  %vm1767 = vweird.f32 %v1760
  %vm1768 = vmor %vm1766, %vm1767
  %v1769 = vsel %vm1768, %v1760, %v1765
  %v1770 = vrsqrt.pop %v1759
  %v1771 = vmul.f32 %v1770, %v1759
  %v1772 = vmul.f32 %v1771, %v1770
  %v1773 = vmul.f32 0.5, %v1772
  %v1774 = vsub.f32 1.5, %v1773
  %v1775 = vmul.f32 %v1770, %v1774
  %vm1776 = vweird.f32 %v1759
  %vm1777 = vweird.f32 %v1770
  %vm1778 = vmor %vm1776, %vm1777
  %v1779 = vsel %vm1778, %v1770, %v1775
  %v1780 = vmul.f32 %v1746, %v1769
  %v1781 = vmul.f32 %v1747, %v1779
  %v1783 = vperm.slane %v1735, 0
  %v1785 = vmul.f32 %v1780, %v1783
  %v1786 = vmul.f32 %v1781, %v1783
  %v1788 = vperm.slane %v1737, 0
  %v1790 = vadd.f32 %v1785, %v1788
  %v1791 = vadd.f32 %v1786, %v1788
  %s1792 = scalar_lea.vmem %s10, 32
  %v1793 = vld [vmem:[%s1792] sm:$0xff]
  %v1794 = vld [vmem:[%s1792 + $0x8] sm:$0xff]
  %v1795 = vld [vmem:[%s1792 + $0x10] sm:$0xff]
  %v1796 = vld [vmem:[%s1792 + $0x18] sm:$0xff]
  %s1797 = scalar_lea.vmem %s11, 1
  %v1798 = vld [vmem:[%s1797] sm:$0x1]
  %v1800 = vperm.slane %v1798, 0
  %v1803 = vsel %vm69, %v1790, 0
  %v1806 = vsel %vm69, %v1791, 0
  %1808 = vmatpush.msra.mxu0 0.0
  %1809 = vmatpush.msra.mxu0 0.0
  %1810 = vmatpush.msra.mxu0 0.0
  %1811 = vmatpush.msra.mxu0 0.0
  %1812 = vmatpush.msra.mxu0 0.0
  %1813 = vmatpush.msra.mxu0 0.0
  %1814 = vmatpush.msra.mxu0 0.0
  %1815 = vmatpush.msra.mxu0 0.0
  %1816 = vmatpush.msra.mxu0 0.0
  %1817 = vmatpush.msra.mxu0 0.0
  %1818 = vmatpush.msra.mxu0 0.0
  %1819 = vmatpush.msra.mxu0 0.0
  %1820 = vmatpush.msra.mxu0 %v1796
  %1821 = vmatpush.msra.mxu0 %v1795
  %1822 = vmatpush.msra.mxu0 %v1794
  %1823 = vmatpush.msra.mxu0 %v1793
  %1824 = vmatmul.f32.gmra.mxu0 %v1803
  %v1825 = vpop.f32.mrf.mxu0
  %v1826 = vadd.f32 %v1800, %v1825
  %1827 = vmatmul.f32.gmra.mxu0 %v1806
  %v1828 = vpop.f32.mrf.mxu0
  %v1829 = vadd.f32 %v1800, %v1828
  %1830 = vdwg.mxu0
  %v1831 = vmul.f32 %v1826, 0.5
  %v1832 = vmul.f32 %v1829, 0.5
  %v1833 = vmul.f32 %v1826, 0.044715
  %v1834 = vmul.f32 %v1829, 0.044715
  %v1835 = vmul.f32 %v1833, %v1826
  %v1836 = vmul.f32 %v1834, %v1829
  %v1837 = vmul.f32 %v1835, %v1826
  %v1838 = vmul.f32 %v1836, %v1829
  %v1839 = vadd.f32 %v1826, %v1837
  %v1840 = vadd.f32 %v1829, %v1838
  %v1841 = vmul.f32 %v1839, 0.7978846
  %v1842 = vmul.f32 %v1840, 0.7978846
  %v1843 = vtanh.pop %v1841
  %v1844 = vtanh.pop %v1842
  %v1845 = vadd.f32 %v1843, 1.0
  %v1846 = vadd.f32 %v1844, 1.0
  %v1847 = vmul.f32 %v1831, %v1845
  %v1848 = vmul.f32 %v1832, %v1846
  %s1849 = scalar_lea.vmem %s12, 128
  %v1850 = vld [vmem:[%s1849] sm:$0xff]
  %v1851 = vld [vmem:[%s1849 + $0x8] sm:$0xff]
  %v1852 = vld [vmem:[%s1849 + $0x10] sm:$0xff]
  %v1853 = vld [vmem:[%s1849 + $0x18] sm:$0xff]
  %v1854 = vld [vmem:[%s1849 + $0x20] sm:$0xff]
  %v1855 = vld [vmem:[%s1849 + $0x28] sm:$0xff]
  %v1856 = vld [vmem:[%s1849 + $0x30] sm:$0xff]
  %v1857 = vld [vmem:[%s1849 + $0x38] sm:$0xff]
  %v1858 = vld [vmem:[%s1849 + $0x40] sm:$0xff]
  %v1859 = vld [vmem:[%s1849 + $0x48] sm:$0xff]
  %v1860 = vld [vmem:[%s1849 + $0x50] sm:$0xff]
  %v1861 = vld [vmem:[%s1849 + $0x58] sm:$0xff]
  %v1862 = vld [vmem:[%s1849 + $0x60] sm:$0xff]
  %v1863 = vld [vmem:[%s1849 + $0x68] sm:$0xff]
  %v1864 = vld [vmem:[%s1849 + $0x70] sm:$0xff]
  %v1865 = vld [vmem:[%s1849 + $0x78] sm:$0xff]
  %s1866 = scalar_lea.vmem %s13, 1
  %v1867 = vld [vmem:[%s1866] sm:$0x1]
  %v1869 = vperm.slane %v1867, 0
  %1871 = vmatpush.msra.mxu0 %v1865
  %1872 = vmatpush.msra.mxu0 %v1864
  %1873 = vmatpush.msra.mxu0 %v1863
  %1874 = vmatpush.msra.mxu0 %v1862
  %1875 = vmatpush.msra.mxu0 %v1861
  %1876 = vmatpush.msra.mxu0 %v1860
  %1877 = vmatpush.msra.mxu0 %v1859
  %1878 = vmatpush.msra.mxu0 %v1858
  %1879 = vmatpush.msra.mxu0 %v1857
  %1880 = vmatpush.msra.mxu0 %v1856
  %1881 = vmatpush.msra.mxu0 %v1855
  %1882 = vmatpush.msra.mxu0 %v1854
  %1883 = vmatpush.msra.mxu0 %v1853
  %1884 = vmatpush.msra.mxu0 %v1852
  %1885 = vmatpush.msra.mxu0 %v1851
  %1886 = vmatpush.msra.mxu0 %v1850
  %1887 = vmatmul.f32.gmra.mxu0 %v1847
  %v1888 = vpop.f32.mrf.mxu0
  %v1889 = vadd.f32 %v1869, %v1888
  %1890 = vmatmul.f32.gmra.mxu0 %v1848
  %v1891 = vpop.f32.mrf.mxu0
  %v1892 = vadd.f32 %v1869, %v1891
  %1893 = vdwg.mxu0
  %v1894 = vadd.f32 %v1889, %v1790
  %v1895 = vadd.f32 %v1892, %v1791
  %s1896 = scalar_lea.vmem %s14, 1
  %v1897 = vld [vmem:[%s1896] sm:$0x1]
  %s1898 = scalar_lea.vmem %s15, 1
  %v1899 = vld [vmem:[%s1898] sm:$0x1]
  %v1900 = vsel %vm69, %v1894, 0.0
  %1901 = vadd.xlane.f32.xlu0 %v1900
  %v1902 = vpop.xlane.xlu0 %1901
  %v1903 = vsel %vm69, %v1895, 0.0
  %1904 = vadd.xlane.f32.xlu0 %v1903
  %v1905 = vpop.xlane.xlu0 %1904
  %v1906 = vmul.f32 %v1902, %v82
  %v1907 = vmul.f32 %v1905, %v82
  %v1908 = vsub.f32 %v1894, %v1906
  %v1909 = vsub.f32 %v1895, %v1907
  %v1910 = vmul.f32 %v1908, %v1908
  %v1911 = vmul.f32 %v1909, %v1909
  %v1912 = vsel %vm69, %v1910, 0.0
  %1913 = vadd.xlane.f32.xlu0 %v1912
  %v1914 = vpop.xlane.xlu0 %1913
  %v1915 = vsel %vm69, %v1911, 0.0
  %1916 = vadd.xlane.f32.xlu0 %v1915
  %v1917 = vpop.xlane.xlu0 %1916
  %v1918 = vmul.f32 %v1914, %v82
  %v1919 = vmul.f32 %v1917, %v82
  %v1920 = vadd.f32 %v1918, 1e-12
  %v1921 = vadd.f32 %v1919, 1e-12
  %v1922 = vrsqrt.pop %v1920
  %v1923 = vmul.f32 %v1922, %v1920
  %v1924 = vmul.f32 %v1923, %v1922
  %v1925 = vmul.f32 0.5, %v1924
  %v1926 = vsub.f32 1.5, %v1925
  %v1927 = vmul.f32 %v1922, %v1926
  %vm1928 = vweird.f32 %v1920
  %vm1929 = vweird.f32 %v1922
  %vm1930 = vmor %vm1928, %vm1929
  %v1931 = vsel %vm1930, %v1922, %v1927
  %v1932 = vrsqrt.pop %v1921
  %v1933 = vmul.f32 %v1932, %v1921
  %v1934 = vmul.f32 %v1933, %v1932
  %v1935 = vmul.f32 0.5, %v1934
  %v1936 = vsub.f32 1.5, %v1935
  %v1937 = vmul.f32 %v1932, %v1936
  %vm1938 = vweird.f32 %v1921
  %vm1939 = vweird.f32 %v1932
  %vm1940 = vmor %vm1938, %vm1939
  %v1941 = vsel %vm1940, %v1932, %v1937
  %v1942 = vmul.f32 %v1908, %v1931
  %v1943 = vmul.f32 %v1909, %v1941
  %v1945 = vperm.slane %v1897, 0
  %v1947 = vmul.f32 %v1942, %v1945
  %v1948 = vmul.f32 %v1943, %v1945
  %v1950 = vperm.slane %v1899, 0
  %v1952 = vadd.f32 %v1947, %v1950
  %v1953 = vadd.f32 %v1948, %v1950
  %v1954 = vld [vmem:[%s16] sm:$0xff]
  %v1955 = vld [vmem:[%s16 + $0x8] sm:$0xff]
  %v1956 = vld [vmem:[%s16 + $0x10] sm:$0xff]
  %v1957 = vld [vmem:[%s16 + $0x18] sm:$0xff]
  %v1958 = vld [vmem:[%s17] sm:$0x1]
  %v1960 = vperm.slane %v1958, 0
  %v1963 = vsel %vm69, %v1952, 0
  %v1966 = vsel %vm69, %v1953, 0
  %1968 = vmatpush.msra.mxu0 0.0
  %1969 = vmatpush.msra.mxu0 0.0
  %1970 = vmatpush.msra.mxu0 0.0
  %1971 = vmatpush.msra.mxu0 0.0
  %1972 = vmatpush.msra.mxu0 0.0
  %1973 = vmatpush.msra.mxu0 0.0
  %1974 = vmatpush.msra.mxu0 0.0
  %1975 = vmatpush.msra.mxu0 0.0
  %1976 = vmatpush.msra.mxu0 0.0
  %1977 = vmatpush.msra.mxu0 0.0
  %1978 = vmatpush.msra.mxu0 0.0
  %1979 = vmatpush.msra.mxu0 0.0
  %1980 = vmatpush.msra.mxu0 %v1957
  %1981 = vmatpush.msra.mxu0 %v1956
  %1982 = vmatpush.msra.mxu0 %v1955
  %1983 = vmatpush.msra.mxu0 %v1954
  %1984 = vmatmul.f32.gmra.mxu0 %v1963
  %v1985 = vpop.f32.mrf.mxu0
  %v1986 = vadd.f32 %v1960, %v1985
  %1987 = vmatmul.f32.gmra.mxu0 %v1966
  %v1988 = vpop.f32.mrf.mxu0
  %v1989 = vadd.f32 %v1960, %v1988
  %1990 = vdwg.mxu0
  %v1991 = vtanh.pop %v1986
  %v1992 = vtanh.pop %v1989
  %v1993 = vld [vmem:[%s18] sm:$0xff]
  %v1994 = vld [vmem:[%s18 + $0x8] sm:$0xff]
  %v1995 = vld [vmem:[%s18 + $0x10] sm:$0xff]
  %v1996 = vld [vmem:[%s18 + $0x18] sm:$0xff]
  %v1997 = vld [vmem:[%s19] sm:$0x1]
  %v1999 = vperm.slane %v1997, 0
  %v2002 = vsel %vm69, %v1991, 0
  %v2005 = vsel %vm69, %v1992, 0
  %2007 = vmatpush.msra.mxu0 0.0
  %2008 = vmatpush.msra.mxu0 0.0
  %2009 = vmatpush.msra.mxu0 0.0
  %2010 = vmatpush.msra.mxu0 0.0
  %2011 = vmatpush.msra.mxu0 0.0
  %2012 = vmatpush.msra.mxu0 0.0
  %2013 = vmatpush.msra.mxu0 0.0
  %2014 = vmatpush.msra.mxu0 0.0
  %2015 = vmatpush.msra.mxu0 0.0
  %2016 = vmatpush.msra.mxu0 0.0
  %2017 = vmatpush.msra.mxu0 0.0
  %2018 = vmatpush.msra.mxu0 0.0
  %2019 = vmatpush.msra.mxu0 %v1996
  %2020 = vmatpush.msra.mxu0 %v1995
  %2021 = vmatpush.msra.mxu0 %v1994
  %2022 = vmatpush.msra.mxu0 %v1993
  %2023 = vmatmul.f32.gmra.mxu0 %v2002
  %v2024 = vpop.f32.mrf.mxu0
  %v2025 = vadd.f32 %v1999, %v2024
  %2026 = vmatmul.f32.gmra.mxu0 %v2005
  %v2027 = vpop.f32.mrf.mxu0
  %v2028 = vadd.f32 %v1999, %v2027
  %2029 = vdwg.mxu0
  %v2030 = vmax.f32 %v2025, 0.0
  %v2031 = vmax.f32 %v2028, 0.0
  %2032 = vst [vmem:[%s20] sm:$0xff] %v2030
  %2033 = vst [vmem:[%s20 + $0x8] sm:$0xff] %v2031
  // Predicated region
  $region82: #{bert_classifier_forward.1} parent=0 // pred_check
    _
  $region83: #{bert_classifier_forward.1} parent=0 // pred_check_branch
    %2035 = sbr.rel (0) target = $region85
  $region84: #{bert_classifier_forward.1} parent=0 // pred_region
    _
  $region85: #{bert_classifier_forward.1} parent=0 // pred_fallthru
    _
  // Predicated region
  $region86: #{bert_classifier_forward.1} parent=0 // pred_check
    _
  $region87: #{bert_classifier_forward.1} parent=0 // pred_check_branch
    %2037 = sbr.rel (0) target = $region89
  $region88: #{bert_classifier_forward.1} parent=0 // pred_region
    _
  $region89: #{bert_classifier_forward.1} parent=0 // pred_fallthru
    _

</llo_original>
